<compile_context>
chip_gen: v7x
topology: tpu7x:2x2x1
jax: 0.10.0
libtpu: 0.0.40
codegen_flags: <defaults>
</compile_context>

<pallas_src>
import numpy as np
import jax
import jax.numpy as jnp
from jax.experimental import pallas as pl
from jax.experimental.pallas import tpu as pltpu


def visual_sa_kernel(local_ref, rawg_ref,
                     wl_t_ref, bl_ref, wg_t_ref, bg_ref, wc_ref, bc_ref,
                     out_ref):
    """One grid step processes TB batch elements.

    local_ref : (TB, N, D)  region embeddings               (f32 or bf16)
    rawg_ref  : (TB, D)     raw global embeddings           (f32 or bf16)
    wl_t_ref  : (D, D)      local Linear weight^T, eval-BN folded in
    bl_ref    : (1, D)      local Linear bias,    eval-BN folded in (f32)
    wg_t_ref  : (D, D)      global Linear weight^T, eval-BN folded in
    bg_ref    : (1, D)      global Linear bias,    eval-BN folded in (f32)
    wc_ref    : (1, D)      common Linear (D -> 1) weight as a row (f32)
    bc_ref    : (1,)        common Linear bias, SMEM scalar (f32)
    out_ref   : (TB, D)     l2-normalized new global embedding (f32)
    """
    tb, n, d = local_ref.shape
    local = local_ref[...]                                          # (TB, N, D)

    # --- embedding_local: Linear (+folded eval BN) -> Tanh (Dropout = identity)
    # One (TB*N, D) x (D, D) MXU matmul per grid step; f32 accumulation.
    l_lin = jnp.dot(local.reshape(tb * n, d), wl_t_ref[...],
                    preferred_element_type=jnp.float32) + bl_ref[...]
    l_emb = jnp.tanh(l_lin).reshape(tb, n, d)                       # (TB, N, D) f32

    # --- embedding_global: Linear (+folded eval BN) -> Tanh
    g_lin = jnp.dot(rawg_ref[...], wg_t_ref[...],
                    preferred_element_type=jnp.float32) + bg_ref[...]
    g_emb = jnp.tanh(g_lin)                                         # (TB, D) f32

    # --- embedding_common(l_emb * g_emb) == sum_d l_emb * (g_emb * wc) + bc.
    # Never materialize the (TB, N, D) `common` tensor.
    gw = g_emb * wc_ref[...]                                        # (TB, D)
    logits = jnp.sum(l_emb * gw[:, None, :], axis=-1) + bc_ref[0]   # (TB, N) lane-dense

    # --- softmax over regions (PyTorch dim=1).  The softmax denominator is a
    # positive per-batch scalar that cancels in the final l2norm, so only
    # exp(logits - max) is needed -> no divide / reciprocal at all.
    e = jnp.exp(logits - jnp.max(logits, axis=-1, keepdims=True))   # (TB, N) f32

    # --- attention-weighted sum of the ORIGINAL local features (f32 accumulation;
    # bf16 `local` is promoted on the fly by the multiply).
    new_g = jnp.sum(e[:, :, None] * local, axis=1)                  # (TB, D) f32

    # --- l2norm along the feature dim via EUP rsqrt (no VPU divide).
    inv_norm = jax.lax.rsqrt(jnp.sum(new_g * new_g, axis=-1, keepdims=True) + 1e-12)
    out_ref[...] = (new_g * inv_norm).astype(out_ref.dtype)


def _vmem_budget():
    """~85% of physical VMEM (headroom for compiler-internal scratch):
    ~109 MiB on v5e/v6e (128 MiB parts), ~54 MiB on v7x / unknown parts."""
    try:
        cap = int(pltpu.get_tpu_info().vmem_capacity_bytes)
    except Exception:
        cap = 64 << 20
    return int(cap * 0.85)


def _choose_tb(B, N, D, itemsize, max_tile_bytes):
    """Batch tile: as big as the tile budget allows (keeps the (TB*N, D) matmul
    rows >= 256 at realistic B*N), but >= 2 grid steps when B >= 2 so the
    'parallel' batch axis can split across both TensorCores on v7x, rounded to
    a multiple of 8 for a sublane-dense (TB, D) output slab."""
    tb = max(1, min(B, max_tile_bytes // max(1, N * D * itemsize)))
    if tb >= B and B >= 2:
        tb = -(-B // 2)                     # ceil(B/2): at least 2 grid steps
    if tb >= 8:
        tb = (tb // 8) * 8
    return int(max(1, tb))


def visual_sa(local, raw_global, params, *, tb=None, use_bf16=None):
    """local: (B, N, D) f32, raw_global: (B, D) f32 -> (B, D) f32."""
    B, N, D = local.shape
    wl_t, bl, wg_t, bg, wc, bc = params

    if use_bf16 is None:
        use_bf16 = D >= 512   # bf16-at-HBM pays off at large D (esp. v5e MXU)
    if use_bf16:
        # Cast the dominant HBM streams + MXU operands ONCE at the boundary;
        # all accumulation / element-wise math inside the kernel stays f32.
        local = local.astype(jnp.bfloat16)
        raw_global = raw_global.astype(jnp.bfloat16)
        wl_t = wl_t.astype(jnp.bfloat16)
        wg_t = wg_t.astype(jnp.bfloat16)
    itemsize = 2 if use_bf16 else 4

    budget = _vmem_budget()
    if tb is None:
        tb = _choose_tb(B, N, D, itemsize,
                        max_tile_bytes=min(24 << 20, budget // 4))
    tb = max(1, min(int(tb), B))

    n_steps = pl.cdiv(B, tb)
    Bp = n_steps * tb
    if Bp != B:
        # Zero-pad the batch; padded rows produce zeros (no NaN) and are sliced off.
        local = jnp.pad(local, ((0, Bp - B), (0, 0), (0, 0)))
        raw_global = jnp.pad(raw_global, ((0, Bp - B), (0, 0)))

    # VMEM estimate (double-buffered per-step tiles + single-buffered weights).
    vmem_est = (2 * tb * N * D * itemsize       # local tiles
                + 2 * tb * D * itemsize         # raw_global tiles
                + 2 * tb * D * 4                # output tiles (f32)
                + 2 * D * D * itemsize          # two (D, D) weights, single-buffered
                + 4 * 8 * 128 * 4)              # small padded side tensors
    vmem_limit = int(min(budget, max(32 << 20, vmem_est + (8 << 20))))

    args = (local, raw_global, wl_t, bl, wg_t, bg, wc, bc)

    def _make_call(single_buffer_weights):
        wkw = ({"pipeline_mode": pl.Buffered(1)}
               if single_buffer_weights else {})
        grid_spec = pltpu.PrefetchScalarGridSpec(
            num_scalar_prefetch=0,
            grid=(n_steps,),
            in_specs=[
                pl.BlockSpec((tb, N, D), lambda b: (b, 0, 0)),          # local
                pl.BlockSpec((tb, D), lambda b: (b, 0)),                # raw_global
                pl.BlockSpec((D, D), lambda b: (0, 0), **wkw),          # wl_t (BN folded)
                pl.BlockSpec((1, D), lambda b: (0, 0), **wkw),          # bl   (BN folded)
                pl.BlockSpec((D, D), lambda b: (0, 0), **wkw),          # wg_t (BN folded)
                pl.BlockSpec((1, D), lambda b: (0, 0), **wkw),          # bg   (BN folded)
                pl.BlockSpec((1, D), lambda b: (0, 0), **wkw),          # wc
                pl.BlockSpec(memory_space=pltpu.MemorySpace.SMEM),      # bc scalar
            ],
            out_specs=pl.BlockSpec((tb, D), lambda b: (b, 0)),
        )
        return pl.pallas_call(
            visual_sa_kernel,
            out_shape=jax.ShapeDtypeStruct((Bp, D), jnp.float32),
            grid_spec=grid_spec,
            compiler_params=pltpu.CompilerParams(
                dimension_semantics=("parallel",),
                vmem_limit_bytes=vmem_limit),
        )

    try:
        out = jax.block_until_ready(_make_call(True)(*args))
    except Exception:
        # TODO(synk): pipeline_mode=pl.Buffered(1) not accepted by this JAX
        # version; fall back to default double-buffering of the weights.
        out = jax.block_until_ready(_make_call(False)(*args))
    return out[:B]


def init_params(key, embed_dim, num_region):
    """Deterministic init matching VisualSA.init_weights() (eval mode)."""
    D, N = embed_dim, num_region
    k1, k2, k3 = jax.random.split(key, 3)

    r_dd = float(np.sqrt(6.0) / np.sqrt(D + D))
    r_d1 = float(np.sqrt(6.0) / np.sqrt(D + 1))

    # nn.Linear weights are (out, in); the kernel takes the transpose (in, out).
    Wl = jax.random.uniform(k1, (D, D), jnp.float32, -r_dd, r_dd)
    Wg = jax.random.uniform(k2, (D, D), jnp.float32, -r_dd, r_dd)
    Wc = jax.random.uniform(k3, (1, D), jnp.float32, -r_d1, r_d1)

    bl = jnp.zeros((D,), jnp.float32)
    bg = jnp.zeros((D,), jnp.float32)
    bc = jnp.zeros((1,), jnp.float32)          # SMEM scalar

    # Eval-mode BatchNorm1d with running_mean=0, running_var=1, gamma=1, beta=0:
    #   y = x / sqrt(1 + eps)  (constant scale => fold into the Linear layers).
    bn_eps = 1e-5
    bn_scale = 1.0 / np.sqrt(1.0 + bn_eps)

    # Local branch: BatchNorm1d(num_region) is per-region in general, but the
    # fresh eval-mode stats make it a constant scalar -> fold into Wl / bl.
    # TODO(synk): with real loaded running stats this fold becomes per-region
    #             and must go back to an in-kernel (N, 1) scale/shift.
    wl_t_folded = Wl.T * bn_scale
    bl_folded = (bl * bn_scale).reshape(1, D)

    # Global branch: per-feature BN -> fold into Wg columns / bg (eval mode).
    wg_t_folded = Wg.T * bn_scale
    bg_folded = (bg * bn_scale).reshape(1, D)

    kernel_params = (wl_t_folded, bl_folded, wg_t_folded, bg_folded, Wc, bc)
    ref_params = (Wl, Wg, Wc, bn_scale)
    return kernel_params, ref_params


def reference(local, raw_global, ref_params):
    """Pure-JAX reference of the PyTorch forward (eval mode)."""
    Wl, Wg, Wc, bn_scale = ref_params
    l_emb = jnp.tanh((local @ Wl.T) * bn_scale)            # biases / BN shifts are 0
    g_emb = jnp.tanh((raw_global @ Wg.T) * bn_scale)
    common = l_emb * g_emb[:, None, :]
    w = (common @ Wc.T)[..., 0]                            # (B, N)
    w = jax.nn.softmax(w, axis=1)
    new_g = jnp.sum(w[..., None] * local, axis=1)          # (B, D)
    norm = jnp.sqrt(jnp.sum(new_g * new_g, axis=-1, keepdims=True)) + 1e-8
    return new_g / norm


if __name__ == "__main__":
    B, N, D = 16, 8, 128   # batch, num_region, embed_dim (small, TPU-friendly)

    key = jax.random.PRNGKey(0)
    kp, kx1, kx2 = jax.random.split(key, 3)

    kernel_params, ref_params = init_params(kp, embed_dim=D, num_region=N)

    local = jax.random.normal(kx1, (B, N, D), jnp.float32)
    raw_global = jnp.mean(local, axis=1) + 0.1 * jax.random.normal(kx2, (B, D), jnp.float32)

    ref = jax.block_until_ready(reference(local, raw_global, ref_params))

    # f32 path, TB=8 -> two grid steps (sublane/lane-dense (8, 128) output slabs).
    out_f32 = jax.block_until_ready(
        visual_sa(local, raw_global, kernel_params, tb=8, use_bf16=False))
    np.testing.assert_allclose(np.asarray(out_f32), np.asarray(ref),
                               rtol=2e-5, atol=2e-5)

    # bf16-at-HBM path (inputs + weights bf16, f32 accumulation), auto TB (>=2 steps).
    out_bf16 = jax.block_until_ready(
        visual_sa(local, raw_global, kernel_params, use_bf16=True))
    np.testing.assert_allclose(np.asarray(out_bf16), np.asarray(ref),
                               rtol=5e-2, atol=5e-2)

    print("KERNEL_OK")
</pallas_src>

<mosaic_0001>
module attributes {stable_mosaic.version = 11 : i64} {
  func.func @visual_sa_kernel(%arg0: i32, %arg1: memref<8x8x128xf32, #tpu.memory_space<vmem>>, %arg2: memref<8x128xf32, #tpu.memory_space<vmem>>, %arg3: memref<128x128xf32, #tpu.memory_space<vmem>>, %arg4: memref<1x128xf32, #tpu.memory_space<vmem>>, %arg5: memref<128x128xf32, #tpu.memory_space<vmem>>, %arg6: memref<1x128xf32, #tpu.memory_space<vmem>>, %arg7: memref<1x128xf32, #tpu.memory_space<vmem>>, %arg8: memref<1xf32, #tpu.memory_space<smem>>, %arg9: memref<8x128xf32, #tpu.memory_space<vmem>>) attributes {dimension_semantics = [#tpu.dimension_semantics<parallel>], iteration_bounds = array<i64: 2>, scalar_prefetch = 0 : i64, scratch_operands = 0 : i64, tpu.core_type = #tpu.core_type<tc>, window_params = [{transform_indices = @transform_0, window_bounds = array<i64: 8, 8, 128>}, {transform_indices = @transform_1, window_bounds = array<i64: 8, 128>}, {pipeline_mode = #tpu.pipeline_mode<synchronous>, transform_indices = @transform_2, window_bounds = array<i64: 128, 128>}, {pipeline_mode = #tpu.pipeline_mode<synchronous>, transform_indices = @transform_3, window_bounds = array<i64: 1, 128>}, {pipeline_mode = #tpu.pipeline_mode<synchronous>, transform_indices = @transform_4, window_bounds = array<i64: 128, 128>}, {pipeline_mode = #tpu.pipeline_mode<synchronous>, transform_indices = @transform_5, window_bounds = array<i64: 1, 128>}, {pipeline_mode = #tpu.pipeline_mode<synchronous>, transform_indices = @transform_6, window_bounds = array<i64: 1, 128>}, {transform_indices = @transform_7, window_bounds = array<i64: 1>}, {transform_indices = @transform_8, window_bounds = array<i64: 8, 128>}]} {
    %c0 = arith.constant 0 : index
    %c0_0 = arith.constant 0 : index
    %c0_1 = arith.constant 0 : index
    %0 = vector.load %arg1[%c0, %c0_0, %c0_1] : memref<8x8x128xf32, #tpu.memory_space<vmem>>, vector<8x8x128xf32>
    %1 = vector.shape_cast %0 : vector<8x8x128xf32> to vector<64x128xf32>
    %c0_2 = arith.constant 0 : index
    %c0_3 = arith.constant 0 : index
    %2 = vector.load %arg3[%c0_2, %c0_3] : memref<128x128xf32, #tpu.memory_space<vmem>>, vector<128x128xf32>
    %cst = arith.constant dense<0.000000e+00> : vector<64x128xf32>
    %3 = tpu.matmul %1, %2, %cst {dimension_numbers = #tpu.dot_dimension_numbers<[1], [0], [0], [1], [0, 0, 1, 1], [], []>} : vector<64x128xf32>, vector<128x128xf32>, vector<64x128xf32> -> vector<64x128xf32>
    %c0_4 = arith.constant 0 : index
    %c0_5 = arith.constant 0 : index
    %4 = vector.load %arg4[%c0_4, %c0_5] : memref<1x128xf32, #tpu.memory_space<vmem>>, vector<1x128xf32>
    %5 = vector.broadcast %4 : vector<1x128xf32> to vector<64x128xf32>
    %6 = arith.addf %3, %5 : vector<64x128xf32>
    %7 = math.tanh %6 : vector<64x128xf32>
    %8 = vector.shape_cast %7 : vector<64x128xf32> to vector<8x8x128xf32>
    %c0_6 = arith.constant 0 : index
    %c0_7 = arith.constant 0 : index
    %9 = vector.load %arg2[%c0_6, %c0_7] : memref<8x128xf32, #tpu.memory_space<vmem>>, vector<8x128xf32>
    %c0_8 = arith.constant 0 : index
    %c0_9 = arith.constant 0 : index
    %10 = vector.load %arg5[%c0_8, %c0_9] : memref<128x128xf32, #tpu.memory_space<vmem>>, vector<128x128xf32>
    %cst_10 = arith.constant dense<0.000000e+00> : vector<8x128xf32>
    %11 = tpu.matmul %9, %10, %cst_10 {dimension_numbers = #tpu.dot_dimension_numbers<[1], [0], [0], [1], [0, 0, 1, 1], [], []>} : vector<8x128xf32>, vector<128x128xf32>, vector<8x128xf32> -> vector<8x128xf32>
    %c0_11 = arith.constant 0 : index
    %c0_12 = arith.constant 0 : index
    %12 = vector.load %arg6[%c0_11, %c0_12] : memref<1x128xf32, #tpu.memory_space<vmem>>, vector<1x128xf32>
    %13 = vector.broadcast %12 : vector<1x128xf32> to vector<8x128xf32>
    %14 = arith.addf %11, %13 : vector<8x128xf32>
    %15 = math.tanh %14 : vector<8x128xf32>
    %c0_13 = arith.constant 0 : index
    %c0_14 = arith.constant 0 : index
    %16 = vector.load %arg7[%c0_13, %c0_14] : memref<1x128xf32, #tpu.memory_space<vmem>>, vector<1x128xf32>
    %17 = vector.broadcast %16 : vector<1x128xf32> to vector<8x128xf32>
    %18 = arith.mulf %15, %17 : vector<8x128xf32>
    %19 = vector.shape_cast %18 : vector<8x128xf32> to vector<8x1x128xf32>
    %20 = vector.broadcast %19 : vector<8x1x128xf32> to vector<8x8x128xf32>
    %21 = arith.mulf %8, %20 : vector<8x8x128xf32>
    %cst_15 = arith.constant dense<0.000000e+00> : vector<8x8xf32>
    %22 = vector.multi_reduction <add>, %21, %cst_15 [2] : vector<8x8x128xf32> to vector<8x8xf32>
    %c0_16 = arith.constant 0 : index
    %23 = memref.load %arg8[%c0_16] : memref<1xf32, #tpu.memory_space<smem>>
    %24 = vector.broadcast %23 : f32 to vector<8x8xf32>
    %25 = arith.addf %22, %24 : vector<8x8xf32>
    %cst_17 = arith.constant dense<0xFF800000> : vector<8xf32>
    %26 = vector.multi_reduction <maximumf>, %25, %cst_17 [1] : vector<8x8xf32> to vector<8xf32>
    %27 = vector.shape_cast %26 : vector<8xf32> to vector<8x1xf32>
    %28 = vector.broadcast %27 : vector<8x1xf32> to vector<8x8xf32>
    %29 = arith.subf %25, %28 : vector<8x8xf32>
    %30 = math.exp %29 : vector<8x8xf32>
    %31 = vector.shape_cast %30 : vector<8x8xf32> to vector<8x8x1xf32>
    %32 = vector.broadcast %31 : vector<8x8x1xf32> to vector<8x8x128xf32>
    %33 = arith.mulf %32, %0 : vector<8x8x128xf32>
    %cst_18 = arith.constant dense<0.000000e+00> : vector<8x128xf32>
    %34 = vector.multi_reduction <add>, %33, %cst_18 [1] : vector<8x8x128xf32> to vector<8x128xf32>
    %35 = arith.mulf %34, %34 : vector<8x128xf32>
    %cst_19 = arith.constant dense<0.000000e+00> : vector<8xf32>
    %36 = vector.multi_reduction <add>, %35, %cst_19 [1] : vector<8x128xf32> to vector<8xf32>
    %37 = vector.shape_cast %36 : vector<8xf32> to vector<8x1xf32>
    %cst_20 = arith.constant 9.99999996E-13 : f32
    %38 = vector.broadcast %cst_20 : f32 to vector<8x1xf32>
    %39 = arith.addf %37, %38 : vector<8x1xf32>
    %40 = math.rsqrt %39 : vector<8x1xf32>
    %41 = vector.broadcast %40 : vector<8x1xf32> to vector<8x128xf32>
    %42 = arith.mulf %34, %41 : vector<8x128xf32>
    %c0_21 = arith.constant 0 : index
    %c0_22 = arith.constant 0 : index
    %43 = vector.load %arg9[%c0_21, %c0_22] : memref<8x128xf32, #tpu.memory_space<vmem>>, vector<8x128xf32>
    tpu.vector_store %arg9[%c0_21, %c0_22], %42 {strides = array<i32>} : memref<8x128xf32, #tpu.memory_space<vmem>>, vector<8x128xf32>,
    return
  }
  func.func @transform_0(%arg0: i32) -> (i32, i32, i32) {
    %c0_i32 = arith.constant 0 : i32
    %c0_i32_0 = arith.constant 0 : i32
    %c0_i32_1 = arith.constant 0 : i32
    return %arg0, %c0_i32, %c0_i32_0 : i32, i32, i32
  }
  func.func @transform_1(%arg0: i32) -> (i32, i32) {
    %c0_i32 = arith.constant 0 : i32
    %c0_i32_0 = arith.constant 0 : i32
    return %arg0, %c0_i32 : i32, i32
  }
  func.func @transform_2(%arg0: i32) -> (i32, i32) {
    %c0_i32 = arith.constant 0 : i32
    %c0_i32_0 = arith.constant 0 : i32
    %c0_i32_1 = arith.constant 0 : i32
    return %c0_i32, %c0_i32_0 : i32, i32
  }
  func.func @transform_3(%arg0: i32) -> (i32, i32) {
    %c0_i32 = arith.constant 0 : i32
    %c0_i32_0 = arith.constant 0 : i32
    %c0_i32_1 = arith.constant 0 : i32
    return %c0_i32, %c0_i32_0 : i32, i32
  }
  func.func @transform_4(%arg0: i32) -> (i32, i32) {
    %c0_i32 = arith.constant 0 : i32
    %c0_i32_0 = arith.constant 0 : i32
    %c0_i32_1 = arith.constant 0 : i32
    return %c0_i32, %c0_i32_0 : i32, i32
  }
  func.func @transform_5(%arg0: i32) -> (i32, i32) {
    %c0_i32 = arith.constant 0 : i32
    %c0_i32_0 = arith.constant 0 : i32
    %c0_i32_1 = arith.constant 0 : i32
    return %c0_i32, %c0_i32_0 : i32, i32
  }
  func.func @transform_6(%arg0: i32) -> (i32, i32) {
    %c0_i32 = arith.constant 0 : i32
    %c0_i32_0 = arith.constant 0 : i32
    %c0_i32_1 = arith.constant 0 : i32
    return %c0_i32, %c0_i32_0 : i32, i32
  }
  func.func @transform_7(%arg0: i32) -> i32 {
    %c0_i32 = arith.constant 0 : i32
    %c0_i32_0 = arith.constant 0 : i32
    return %c0_i32 : i32
  }
  func.func @transform_8(%arg0: i32) -> (i32, i32) {
    %c0_i32 = arith.constant 0 : i32
    %c0_i32_0 = arith.constant 0 : i32
    return %arg0, %c0_i32 : i32, i32
  }
}

module attributes {stable_mosaic.version = 11 : i64} {
  func.func @visual_sa_kernel(%arg0: i32, %arg1: memref<8x8x128xf32, #tpu.memory_space<vmem>>, %arg2: memref<8x128xf32, #tpu.memory_space<vmem>>, %arg3: memref<128x128xf32, #tpu.memory_space<vmem>>, %arg4: memref<1x128xf32, #tpu.memory_space<vmem>>, %arg5: memref<128x128xf32, #tpu.memory_space<vmem>>, %arg6: memref<1x128xf32, #tpu.memory_space<vmem>>, %arg7: memref<1x128xf32, #tpu.memory_space<vmem>>, %arg8: memref<1xf32, #tpu.memory_space<smem>>, %arg9: memref<8x128xf32, #tpu.memory_space<vmem>>) attributes {dimension_semantics = [#tpu.dimension_semantics<parallel>], iteration_bounds = array<i64: 2>, scalar_prefetch = 0 : i64, scratch_operands = 0 : i64, tpu.core_type = #tpu.core_type<tc>, window_params = [{transform_indices = @transform_0, window_bounds = array<i64: 8, 8, 128>}, {transform_indices = @transform_1, window_bounds = array<i64: 8, 128>}, {pipeline_mode = #tpu.pipeline_mode<synchronous>, transform_indices = @transform_2, window_bounds = array<i64: 128, 128>}, {pipeline_mode = #tpu.pipeline_mode<synchronous>, transform_indices = @transform_3, window_bounds = array<i64: 1, 128>}, {pipeline_mode = #tpu.pipeline_mode<synchronous>, transform_indices = @transform_4, window_bounds = array<i64: 128, 128>}, {pipeline_mode = #tpu.pipeline_mode<synchronous>, transform_indices = @transform_5, window_bounds = array<i64: 1, 128>}, {pipeline_mode = #tpu.pipeline_mode<synchronous>, transform_indices = @transform_6, window_bounds = array<i64: 1, 128>}, {transform_indices = @transform_7, window_bounds = array<i64: 1>}, {transform_indices = @transform_8, window_bounds = array<i64: 8, 128>}]} {
    %c0 = arith.constant 0 : index
    %c0_0 = arith.constant 0 : index
    %c0_1 = arith.constant 0 : index
    %0 = vector.load %arg1[%c0, %c0_0, %c0_1] : memref<8x8x128xf32, #tpu.memory_space<vmem>>, vector<8x8x128xf32>
    %1 = vector.shape_cast %0 : vector<8x8x128xf32> to vector<64x128xf32>
    %c0_2 = arith.constant 0 : index
    %c0_3 = arith.constant 0 : index
    %2 = vector.load %arg3[%c0_2, %c0_3] : memref<128x128xf32, #tpu.memory_space<vmem>>, vector<128x128xf32>
    %cst = arith.constant dense<0.000000e+00> : vector<64x128xf32>
    %3 = tpu.matmul %1, %2, %cst {dimension_numbers = #tpu.dot_dimension_numbers<[1], [0], [0], [1], [0, 0, 1, 1], [], []>} : vector<64x128xf32>, vector<128x128xf32>, vector<64x128xf32> -> vector<64x128xf32>
    %c0_4 = arith.constant 0 : index
    %c0_5 = arith.constant 0 : index
    %4 = vector.load %arg4[%c0_4, %c0_5] : memref<1x128xf32, #tpu.memory_space<vmem>>, vector<1x128xf32>
    %5 = vector.broadcast %4 : vector<1x128xf32> to vector<64x128xf32>
    %6 = arith.addf %3, %5 : vector<64x128xf32>
    %7 = math.tanh %6 : vector<64x128xf32>
    %8 = vector.shape_cast %7 : vector<64x128xf32> to vector<8x8x128xf32>
    %c0_6 = arith.constant 0 : index
    %c0_7 = arith.constant 0 : index
    %9 = vector.load %arg2[%c0_6, %c0_7] : memref<8x128xf32, #tpu.memory_space<vmem>>, vector<8x128xf32>
    %c0_8 = arith.constant 0 : index
    %c0_9 = arith.constant 0 : index
    %10 = vector.load %arg5[%c0_8, %c0_9] : memref<128x128xf32, #tpu.memory_space<vmem>>, vector<128x128xf32>
    %cst_10 = arith.constant dense<0.000000e+00> : vector<8x128xf32>
    %11 = tpu.matmul %9, %10, %cst_10 {dimension_numbers = #tpu.dot_dimension_numbers<[1], [0], [0], [1], [0, 0, 1, 1], [], []>} : vector<8x128xf32>, vector<128x128xf32>, vector<8x128xf32> -> vector<8x128xf32>
    %c0_11 = arith.constant 0 : index
    %c0_12 = arith.constant 0 : index
    %12 = vector.load %arg6[%c0_11, %c0_12] : memref<1x128xf32, #tpu.memory_space<vmem>>, vector<1x128xf32>
    %13 = vector.broadcast %12 : vector<1x128xf32> to vector<8x128xf32>
    %14 = arith.addf %11, %13 : vector<8x128xf32>
    %15 = math.tanh %14 : vector<8x128xf32>
    %c0_13 = arith.constant 0 : index
    %c0_14 = arith.constant 0 : index
    %16 = vector.load %arg7[%c0_13, %c0_14] : memref<1x128xf32, #tpu.memory_space<vmem>>, vector<1x128xf32>
    %17 = vector.broadcast %16 : vector<1x128xf32> to vector<8x128xf32>
    %18 = arith.mulf %15, %17 : vector<8x128xf32>
    %19 = vector.shape_cast %18 : vector<8x128xf32> to vector<8x1x128xf32>
    %20 = vector.broadcast %19 : vector<8x1x128xf32> to vector<8x8x128xf32>
    %21 = arith.mulf %8, %20 : vector<8x8x128xf32>
    %cst_15 = arith.constant dense<0.000000e+00> : vector<8x8xf32>
    %22 = vector.multi_reduction <add>, %21, %cst_15 [2] : vector<8x8x128xf32> to vector<8x8xf32>
    %c0_16 = arith.constant 0 : index
    %23 = memref.load %arg8[%c0_16] : memref<1xf32, #tpu.memory_space<smem>>
    %24 = vector.broadcast %23 : f32 to vector<8x8xf32>
    %25 = arith.addf %22, %24 : vector<8x8xf32>
    %cst_17 = arith.constant dense<0xFF800000> : vector<8xf32>
    %26 = vector.multi_reduction <maximumf>, %25, %cst_17 [1] : vector<8x8xf32> to vector<8xf32>
    %27 = vector.shape_cast %26 : vector<8xf32> to vector<8x1xf32>
    %28 = vector.broadcast %27 : vector<8x1xf32> to vector<8x8xf32>
    %29 = arith.subf %25, %28 : vector<8x8xf32>
    %30 = math.exp %29 : vector<8x8xf32>
    %31 = vector.shape_cast %30 : vector<8x8xf32> to vector<8x8x1xf32>
    %32 = vector.broadcast %31 : vector<8x8x1xf32> to vector<8x8x128xf32>
    %33 = arith.mulf %32, %0 : vector<8x8x128xf32>
    %cst_18 = arith.constant dense<0.000000e+00> : vector<8x128xf32>
    %34 = vector.multi_reduction <add>, %33, %cst_18 [1] : vector<8x8x128xf32> to vector<8x128xf32>
    %35 = arith.mulf %34, %34 : vector<8x128xf32>
    %cst_19 = arith.constant dense<0.000000e+00> : vector<8xf32>
    %36 = vector.multi_reduction <add>, %35, %cst_19 [1] : vector<8x128xf32> to vector<8xf32>
    %37 = vector.shape_cast %36 : vector<8xf32> to vector<8x1xf32>
    %cst_20 = arith.constant 9.99999996E-13 : f32
    %38 = vector.broadcast %cst_20 : f32 to vector<8x1xf32>
    %39 = arith.addf %37, %38 : vector<8x1xf32>
    %40 = math.rsqrt %39 : vector<8x1xf32>
    %41 = vector.broadcast %40 : vector<8x1xf32> to vector<8x128xf32>
    %42 = arith.mulf %34, %41 : vector<8x128xf32>
    %c0_21 = arith.constant 0 : index
    %c0_22 = arith.constant 0 : index
    %43 = vector.load %arg9[%c0_21, %c0_22] : memref<8x128xf32, #tpu.memory_space<vmem>>, vector<8x128xf32>
    tpu.vector_store %arg9[%c0_21, %c0_22], %42 {strides = array<i32>} : memref<8x128xf32, #tpu.memory_space<vmem>>, vector<8x128xf32>,
    return
  }
  func.func @transform_0(%arg0: i32) -> (i32, i32, i32) {
    %c0_i32 = arith.constant 0 : i32
    %c0_i32_0 = arith.constant 0 : i32
    %c0_i32_1 = arith.constant 0 : i32
    return %arg0, %c0_i32, %c0_i32_0 : i32, i32, i32
  }
  func.func @transform_1(%arg0: i32) -> (i32, i32) {
    %c0_i32 = arith.constant 0 : i32
    %c0_i32_0 = arith.constant 0 : i32
    return %arg0, %c0_i32 : i32, i32
  }
  func.func @transform_2(%arg0: i32) -> (i32, i32) {
    %c0_i32 = arith.constant 0 : i32
    %c0_i32_0 = arith.constant 0 : i32
    %c0_i32_1 = arith.constant 0 : i32
    return %c0_i32, %c0_i32_0 : i32, i32
  }
  func.func @transform_3(%arg0: i32) -> (i32, i32) {
    %c0_i32 = arith.constant 0 : i32
    %c0_i32_0 = arith.constant 0 : i32
    %c0_i32_1 = arith.constant 0 : i32
    return %c0_i32, %c0_i32_0 : i32, i32
  }
  func.func @transform_4(%arg0: i32) -> (i32, i32) {
    %c0_i32 = arith.constant 0 : i32
    %c0_i32_0 = arith.constant 0 : i32
    %c0_i32_1 = arith.constant 0 : i32
    return %c0_i32, %c0_i32_0 : i32, i32
  }
  func.func @transform_5(%arg0: i32) -> (i32, i32) {
    %c0_i32 = arith.constant 0 : i32
    %c0_i32_0 = arith.constant 0 : i32
    %c0_i32_1 = arith.constant 0 : i32
    return %c0_i32, %c0_i32_0 : i32, i32
  }
  func.func @transform_6(%arg0: i32) -> (i32, i32) {
    %c0_i32 = arith.constant 0 : i32
    %c0_i32_0 = arith.constant 0 : i32
    %c0_i32_1 = arith.constant 0 : i32
    return %c0_i32, %c0_i32_0 : i32, i32
  }
  func.func @transform_7(%arg0: i32) -> i32 {
    %c0_i32 = arith.constant 0 : i32
    %c0_i32_0 = arith.constant 0 : i32
    return %c0_i32 : i32
  }
  func.func @transform_8(%arg0: i32) -> (i32, i32) {
    %c0_i32 = arith.constant 0 : i32
    %c0_i32_0 = arith.constant 0 : i32
    return %arg0, %c0_i32 : i32, i32
  }
}

</mosaic_0001>

<llo_original>
// kernel: tpu_custom_call.1
$region0: #{tpu_custom_call.1}
  #allocation0 [shape = 'u32[]', space=smem, size = 0x4, offset = 0x4, fixed_abs, tag = 'smem constant byte address 0x4 - core index']
  #allocation1 [shape = 'u32[144,128]{1,0:T(1,128)}', space=vmem, size = 0x12000, scoped, tag = 'internal scratch']
  #allocation2 [shape = 'f32[1]{0:T(128)S(6)}', space=smem, size = 0x200, scoped, tag = 'scoped memory for tpu_custom_call.1']
  %s0 = inlined_call_operand.hbm [shape: f32[16,8,128], index: 0, kind: input, shape index: {}]
  %s1 = inlined_call_operand.hbm [shape: f32[16,128], index: 1, kind: input, shape index: {}]
  %s2 = inlined_call_operand.hbm [shape: f32[128,128], index: 2, kind: input, shape index: {}]
  %s3 = inlined_call_operand.vmem [shape: f32[1,128], index: 3, kind: input, shape index: {}]
  %s4 = inlined_call_operand.hbm [shape: f32[128,128], index: 4, kind: input, shape index: {}]
  %s5 = inlined_call_operand.vmem [shape: f32[1,128], index: 5, kind: input, shape index: {}]
  %s6 = inlined_call_operand.vmem [shape: f32[1,128], index: 6, kind: input, shape index: {}]
  %s7 = inlined_call_operand.<no memory space> [shape: f32[1], index: 7, kind: input, shape index: {}]
  %s8 = inlined_call_operand.hbm [shape: f32[16,128], index: 8, kind: output, shape index: {}]
  %s9 = sld [smem:[#allocation0]]
  $region81: #{tpu_custom_call.1} parent=0
    _
  %s11 = ssub.s32 1, %s9
  %s12 = scalar_select 0, %s11, %s9
  %13 = sst [smem:[#allocation2]] %s7
  $region1: #{tpu_custom_call.1} parent=0
    #allocation3 [shape = 'u8[65536]{0}', space=vmem, size = 0x10000, scoped, tag = 'input window, operand 0']
    #allocation4 [shape = 's32[2]{0}', space=sflag, size = 0x8, scoped, tag = 'scoped memory for tpu_custom_call.1']
    #allocation5 [shape = 's32[2]{0}', space=sflag, size = 0x8, scoped, tag = 'scoped memory for tpu_custom_call.1']
    #allocation6 [shape = 'u8[8192]{0}', space=vmem, size = 0x2000, scoped, tag = 'input window, operand 1']
    #allocation7 [shape = 's32[2]{0}', space=sflag, size = 0x8, scoped, tag = 'scoped memory for tpu_custom_call.1']
    #allocation8 [shape = 'u8[65536]{0}', space=vmem, size = 0x10000, scoped, tag = 'input window, operand 2, single buffered']
    #allocation9 [shape = 'u8[65536]{0}', space=vmem, size = 0x10000, scoped, tag = 'input window, operand 4, single buffered']
    #allocation10 [shape = 's32[1]{0}', space=sflag, size = 0x4, scoped, tag = 'scoped memory for tpu_custom_call.1']
    #allocation11 [shape = 'u8[8192]{0}', space=vmem, size = 0x2000, scoped, tag = 'output window, operand 0']
    %14 = vsyncpa [#allocation4], 0
    %s15 = scalar_lea.sflag [#allocation4], 1
    %16 = vsyncpa %s15, 0
    %17 = vsyncpa [#allocation7], 0
    %s18 = scalar_lea.sflag [#allocation7], 1
    %19 = vsyncpa %s18, 0
    %20 = vsyncpa [#allocation10], 0
    %21 = vsyncpa [#allocation5], 0
    %s22 = scalar_lea.sflag [#allocation5], 1
    %23 = vsyncpa %s22, 0
    loop: start=0, step=1, limit=4
    $region2: #{tpu_custom_call.1} parent=1 // loop_pre_header
      _
    $region3: #{tpu_custom_call.1} parent=1 // loop_header
      %s25 = sphi 0, %s29
      %p26 = scmp.ge.s32.totalorder %s25, 4
      %s35 = sphi 0, %s37
      %s38 = sphi 0, %s35
      %s39 = sphi 0, %s38
      %s55 = sphi 0, %s39
      %s61 = sphi 0, %s63
      %s64 = sphi 0, %s61
      %s65 = sphi 0, %s64
      %s81 = sphi 0, %s65
      %s85 = sphi 0, %s85
      %s87 = sphi 0, %s85
      %s88 = sphi 0, %s87
      %s102 = sphi 0, %s88
      %s106 = sphi 0, %s106
      %s108 = sphi 0, %s106
      %s109 = sphi 0, %s108
      %s123 = sphi 0, %s109
      %s127 = sphi 0, %s127
      %s129 = sphi 0, %s127
      %s130 = sphi 0, %s129
      %s144 = sphi 0, %s130
      %s148 = sphi 0, %s148
      %s150 = sphi 0, %s148
      %s151 = sphi 0, %s150
      %s165 = sphi 0, %s151
      %s169 = sphi 0, %s169
      %s171 = sphi 0, %s169
      %s172 = sphi 0, %s171
      %s186 = sphi 0, %s172
      %s190 = sphi 0, %s190
      %s192 = sphi 0, %s190
      %s193 = sphi 0, %s192
      %s207 = sphi 0, %s193
      %s213 = sphi 0, %s215
      %s216 = sphi 0, %s213
      %s217 = sphi 0, %s216
      %s233 = sphi 0, %s217
    $region4: #{tpu_custom_call.1} parent=1 // loop_header_branch
      %28 = sbr.rel (%p26) target = $region8
    $region5: #{tpu_custom_call.1} parent=1 // loop_body
      %s30 = ssub.s32 %s25, 1
      %s31 = ssub.s32 %s25, 2
      %s32 = sadd.s32 %s25, 1
      %s33 = ssub.s32 %s25, %s32
      %p34 = scmp.eq.s32.totalorder %s33, 0
      %s36 = sadd.s32 %s35, 1
      %s37 = scalar_select %p34, %s35, %s36
      %p40 = pneg %p34
      %p41 = scmp.eq.s32.totalorder %s25, 1
      %p42 = por %p40, %p41
      %p43 = scmp.ne.s32.totalorder %s35, %s38
      %p44 = scmp.eq.s32.totalorder %s25, 0
      %p45 = por %p43, %p44
      %p46 = scmp.ne.s32.totalorder %s35, %s38
      %p47 = scmp.eq.s32.totalorder %s30, 1
      %p48 = por %p46, %p47
      %p49 = scmp.ne.s32.totalorder %s38, %s39
      %p50 = scmp.eq.s32.totalorder %s30, 0
      %p51 = por %p49, %p50
      %p52 = scmp.ne.s32.totalorder %s38, %s39
      %p53 = scmp.eq.s32.totalorder %s31, 1
      %p54 = por %p52, %p53
      %p56 = scmp.ne.s32.totalorder %s39, %s55
      %p57 = scmp.eq.s32.totalorder %s31, 0
      %p58 = por %p56, %p57
      %s59 = ssub.s32 %s25, %s32
      %p60 = scmp.eq.s32.totalorder %s59, 0
      %s62 = sadd.s32 %s61, 1
      %s63 = scalar_select %p60, %s61, %s62
      %p66 = pneg %p60
      %p67 = scmp.eq.s32.totalorder %s25, 1
      %p68 = por %p66, %p67
      %p69 = scmp.ne.s32.totalorder %s61, %s64
      %p70 = scmp.eq.s32.totalorder %s25, 0
      %p71 = por %p69, %p70
      %p72 = scmp.ne.s32.totalorder %s61, %s64
      %p73 = scmp.eq.s32.totalorder %s30, 1
      %p74 = por %p72, %p73
      %p75 = scmp.ne.s32.totalorder %s64, %s65
      %p76 = scmp.eq.s32.totalorder %s30, 0
      %p77 = por %p75, %p76
      %p78 = scmp.ne.s32.totalorder %s64, %s65
      %p79 = scmp.eq.s32.totalorder %s31, 1
      %p80 = por %p78, %p79
      %p82 = scmp.ne.s32.totalorder %s65, %s81
      %p83 = scmp.eq.s32.totalorder %s31, 0
      %p84 = por %p82, %p83
      %s86 = sadd.s32 %s85, 1
      %p89 = scmp.eq.s32.totalorder %s25, 1
      %p90 = scmp.ne.s32.totalorder %s85, %s87
      %p91 = scmp.eq.s32.totalorder %s25, 0
      %p92 = por %p90, %p91
      %p93 = scmp.ne.s32.totalorder %s85, %s87
      %p94 = scmp.eq.s32.totalorder %s30, 1
      %p95 = por %p93, %p94
      %p96 = scmp.ne.s32.totalorder %s87, %s88
      %p97 = scmp.eq.s32.totalorder %s30, 0
      %p98 = por %p96, %p97
      %p99 = scmp.ne.s32.totalorder %s87, %s88
      %p100 = scmp.eq.s32.totalorder %s31, 1
      %p101 = por %p99, %p100
      %p103 = scmp.ne.s32.totalorder %s88, %s102
      %p104 = scmp.eq.s32.totalorder %s31, 0
      %p105 = por %p103, %p104
      %s107 = sadd.s32 %s106, 1
      %p110 = scmp.eq.s32.totalorder %s25, 1
      %p111 = scmp.ne.s32.totalorder %s106, %s108
      %p112 = scmp.eq.s32.totalorder %s25, 0
      %p113 = por %p111, %p112
      %p114 = scmp.ne.s32.totalorder %s106, %s108
      %p115 = scmp.eq.s32.totalorder %s30, 1
      %p116 = por %p114, %p115
      %p117 = scmp.ne.s32.totalorder %s108, %s109
      %p118 = scmp.eq.s32.totalorder %s30, 0
      %p119 = por %p117, %p118
      %p120 = scmp.ne.s32.totalorder %s108, %s109
      %p121 = scmp.eq.s32.totalorder %s31, 1
      %p122 = por %p120, %p121
      %p124 = scmp.ne.s32.totalorder %s109, %s123
      %p125 = scmp.eq.s32.totalorder %s31, 0
      %p126 = por %p124, %p125
      %s128 = sadd.s32 %s127, 1
      %p131 = scmp.eq.s32.totalorder %s25, 1
      %p132 = scmp.ne.s32.totalorder %s127, %s129
      %p133 = scmp.eq.s32.totalorder %s25, 0
      %p134 = por %p132, %p133
      %p135 = scmp.ne.s32.totalorder %s127, %s129
      %p136 = scmp.eq.s32.totalorder %s30, 1
      %p137 = por %p135, %p136
      %p138 = scmp.ne.s32.totalorder %s129, %s130
      %p139 = scmp.eq.s32.totalorder %s30, 0
      %p140 = por %p138, %p139
      %p141 = scmp.ne.s32.totalorder %s129, %s130
      %p142 = scmp.eq.s32.totalorder %s31, 1
      %p143 = por %p141, %p142
      %p145 = scmp.ne.s32.totalorder %s130, %s144
      %p146 = scmp.eq.s32.totalorder %s31, 0
      %p147 = por %p145, %p146
      %s149 = sadd.s32 %s148, 1
      %p152 = scmp.eq.s32.totalorder %s25, 1
      %p153 = scmp.ne.s32.totalorder %s148, %s150
      %p154 = scmp.eq.s32.totalorder %s25, 0
      %p155 = por %p153, %p154
      %p156 = scmp.ne.s32.totalorder %s148, %s150
      %p157 = scmp.eq.s32.totalorder %s30, 1
      %p158 = por %p156, %p157
      %p159 = scmp.ne.s32.totalorder %s150, %s151
      %p160 = scmp.eq.s32.totalorder %s30, 0
      %p161 = por %p159, %p160
      %p162 = scmp.ne.s32.totalorder %s150, %s151
      %p163 = scmp.eq.s32.totalorder %s31, 1
      %p164 = por %p162, %p163
      %p166 = scmp.ne.s32.totalorder %s151, %s165
      %p167 = scmp.eq.s32.totalorder %s31, 0
      %p168 = por %p166, %p167
      %s170 = sadd.s32 %s169, 1
      %p173 = scmp.eq.s32.totalorder %s25, 1
      %p174 = scmp.ne.s32.totalorder %s169, %s171
      %p175 = scmp.eq.s32.totalorder %s25, 0
      %p176 = por %p174, %p175
      %p177 = scmp.ne.s32.totalorder %s169, %s171
      %p178 = scmp.eq.s32.totalorder %s30, 1
      %p179 = por %p177, %p178
      %p180 = scmp.ne.s32.totalorder %s171, %s172
      %p181 = scmp.eq.s32.totalorder %s30, 0
      %p182 = por %p180, %p181
      %p183 = scmp.ne.s32.totalorder %s171, %s172
      %p184 = scmp.eq.s32.totalorder %s31, 1
      %p185 = por %p183, %p184
      %p187 = scmp.ne.s32.totalorder %s172, %s186
      %p188 = scmp.eq.s32.totalorder %s31, 0
      %p189 = por %p187, %p188
      %s191 = sadd.s32 %s190, 1
      %p194 = scmp.eq.s32.totalorder %s25, 1
      %p195 = scmp.ne.s32.totalorder %s190, %s192
      %p196 = scmp.eq.s32.totalorder %s25, 0
      %p197 = por %p195, %p196
      %p198 = scmp.ne.s32.totalorder %s190, %s192
      %p199 = scmp.eq.s32.totalorder %s30, 1
      %p200 = por %p198, %p199
      %p201 = scmp.ne.s32.totalorder %s192, %s193
      %p202 = scmp.eq.s32.totalorder %s30, 0
      %p203 = por %p201, %p202
      %p204 = scmp.ne.s32.totalorder %s192, %s193
      %p205 = scmp.eq.s32.totalorder %s31, 1
      %p206 = por %p204, %p205
      %p208 = scmp.ne.s32.totalorder %s193, %s207
      %p209 = scmp.eq.s32.totalorder %s31, 0
      %p210 = por %p208, %p209
      %s211 = ssub.s32 %s25, %s32
      %p212 = scmp.eq.s32.totalorder %s211, 0
      %s214 = sadd.s32 %s213, 1
      %s215 = scalar_select %p212, %s213, %s214
      %p218 = pneg %p212
      %p219 = scmp.eq.s32.totalorder %s25, 1
      %p220 = por %p218, %p219
      %p221 = scmp.ne.s32.totalorder %s213, %s216
      %p222 = scmp.eq.s32.totalorder %s25, 0
      %p223 = por %p221, %p222
      %p224 = scmp.ne.s32.totalorder %s213, %s216
      %p225 = scmp.eq.s32.totalorder %s30, 1
      %p226 = por %p224, %p225
      %p227 = scmp.ne.s32.totalorder %s216, %s217
      %p228 = scmp.eq.s32.totalorder %s30, 0
      %p229 = por %p227, %p228
      %p230 = scmp.ne.s32.totalorder %s216, %s217
      %p231 = scmp.eq.s32.totalorder %s31, 1
      %p232 = por %p230, %p231
      %p234 = scmp.ne.s32.totalorder %s217, %s233
      %p235 = scmp.eq.s32.totalorder %s31, 0
      %p236 = por %p234, %p235
      %p237 = scmp.le.s32.totalorder 1, %s25
      %p238 = scmp.lt.s32.totalorder %s25, 3
      %p239 = pnand %p237, %p238
      %p240 = pneg %p239
      // Predicated region
      $region9: #{tpu_custom_call.1} parent=5 // pred_check
        _
      $region10: #{tpu_custom_call.1} parent=5 // pred_check_branch
        %242 = sbr.rel (%p239) target = $region12
      $region11: #{tpu_custom_call.1} parent=5 // pred_region
        %s243 = ssub.s32 %s25, 1
        // Predicated region
        $region13: #{tpu_custom_call.1} parent=11 // pred_check
          %p244 = pneg %p98
        $region14: #{tpu_custom_call.1} parent=11 // pred_check_branch
          %246 = sbr.rel (%p244) target = $region16
        $region15: #{tpu_custom_call.1} parent=11 // pred_region
          %s248 = ssub.s32 2048, 2048
          %249 = vsyncadd [#allocation7], %s248
          %s250 = sshll.u32 [#allocation8], 4
          %s251 = int_to_ptr.vmem [resolvable:$true] %s250
          %256 = dma.hbm_to_vmem [thread:$0]  %s2, 2048, %s251, [#allocation7], 128, 128, 8
        $region16: #{tpu_custom_call.1} parent=11 // pred_fallthru
          _
        // Predicated region
        $region17: #{tpu_custom_call.1} parent=11 // pred_check
          %p257 = pneg %p119
        $region18: #{tpu_custom_call.1} parent=11 // pred_check_branch
          %259 = sbr.rel (%p257) target = $region20
        $region19: #{tpu_custom_call.1} parent=11 // pred_region
          _
        $region20: #{tpu_custom_call.1} parent=11 // pred_fallthru
          _
        // Predicated region
        $region21: #{tpu_custom_call.1} parent=11 // pred_check
          %p260 = pneg %p140
        $region22: #{tpu_custom_call.1} parent=11 // pred_check_branch
          %262 = sbr.rel (%p260) target = $region24
        $region23: #{tpu_custom_call.1} parent=11 // pred_region
          %s264 = ssub.s32 2048, 2048
          %265 = vsyncadd [#allocation10], %s264
          %s266 = sshll.u32 [#allocation9], 4
          %s267 = int_to_ptr.vmem [resolvable:$true] %s266
          %272 = dma.hbm_to_vmem [thread:$0]  %s4, 2048, %s267, [#allocation10], 128, 128, 8
        $region24: #{tpu_custom_call.1} parent=11 // pred_fallthru
          _
        // Predicated region
        $region25: #{tpu_custom_call.1} parent=11 // pred_check
          %p273 = pneg %p161
        $region26: #{tpu_custom_call.1} parent=11 // pred_check_branch
          %275 = sbr.rel (%p273) target = $region28
        $region27: #{tpu_custom_call.1} parent=11 // pred_region
          _
        $region28: #{tpu_custom_call.1} parent=11 // pred_fallthru
          _
        // Predicated region
        $region29: #{tpu_custom_call.1} parent=11 // pred_check
          %p276 = pneg %p182
        $region30: #{tpu_custom_call.1} parent=11 // pred_check_branch
          %278 = sbr.rel (%p276) target = $region32
        $region31: #{tpu_custom_call.1} parent=11 // pred_region
          _
        $region32: #{tpu_custom_call.1} parent=11 // pred_fallthru
          _
        // Predicated region
        $region33: #{tpu_custom_call.1} parent=11 // pred_check
          %p279 = pneg %p203
        $region34: #{tpu_custom_call.1} parent=11 // pred_check_branch
          %281 = sbr.rel (%p279) target = $region36
        $region35: #{tpu_custom_call.1} parent=11 // pred_region
          _
        $region36: #{tpu_custom_call.1} parent=11 // pred_fallthru
          _
      $region12: #{tpu_custom_call.1} parent=5 // pred_fallthru
        _
      %p282 = scmp.lt.s32.totalorder %s25, 2
      // Predicated region
      $region37: #{tpu_custom_call.1} parent=5 // pred_check
        %p283 = pneg %p282
      $region38: #{tpu_custom_call.1} parent=5 // pred_check_branch
        %285 = sbr.rel (%p283) target = $region40
      $region39: #{tpu_custom_call.1} parent=5 // pred_region
        // Predicated region
        $region41: #{tpu_custom_call.1} parent=39 // pred_check
          %p286 = pneg %p45
        $region42: #{tpu_custom_call.1} parent=39 // pred_check_branch
          %288 = sbr.rel (%p286) target = $region44
        $region43: #{tpu_custom_call.1} parent=39 // pred_region
          %s289 = sand.u32 %s35, 1
          %s290 = scalar_lea.sflag [#allocation4], %s289
          %s291 = sand.u32 %s35, 1
          %s292 = smul.addr %s291, 64
          %s293 = scalar_lea.vmem [#allocation3], %s292
          %s294 = smul.u32 8, %s25
          %s296 = ssub.s32 1024, 1024
          %297 = vsyncadd %s290, %s296
          %s298 = smul.addr %s294, 128
          %s299 = scalar_lea.hbm %s0, %s298
          %s300 = sshll.u32 %s293, 4
          %s301 = int_to_ptr.vmem [resolvable:$true] %s300
          %306 = dma.hbm_to_vmem [thread:$0]  %s299, 1024, %s301, %s290, 128, 128, 8
        $region44: #{tpu_custom_call.1} parent=39 // pred_fallthru
          _
        // Predicated region
        $region45: #{tpu_custom_call.1} parent=39 // pred_check
          %p307 = pneg %p71
        $region46: #{tpu_custom_call.1} parent=39 // pred_check_branch
          %309 = sbr.rel (%p307) target = $region48
        $region47: #{tpu_custom_call.1} parent=39 // pred_region
          %s310 = sand.u32 %s25, 1
          %s311 = scalar_lea.sflag [#allocation7], %s310
          %s312 = sand.u32 %s61, 1
          %s313 = smul.addr %s312, 8
          %s314 = scalar_lea.vmem [#allocation6], %s313
          %s316 = ssub.s32 128, 128
          %317 = vsyncadd %s311, %s316
          %s318 = smul.addr %s25, 128
          %s319 = scalar_lea.hbm %s1, %s318
          %s321 = sshll.u32 %s314, 4
          %s322 = int_to_ptr.vmem [resolvable:$true] %s321
          %324 = dma.hbm_to_vmem [thread:$0]  %s319, 128, %s322, %s311
        $region48: #{tpu_custom_call.1} parent=39 // pred_fallthru
          _
      $region40: #{tpu_custom_call.1} parent=5 // pred_fallthru
        _
      %p325 = scmp.le.s32.totalorder 1, %s25
      %p326 = scmp.lt.s32.totalorder %s25, 3
      %p327 = pnand %p325, %p326
      %p328 = pneg %p327
      // Predicated region
      $region49: #{tpu_custom_call.1} parent=5 // pred_check
        _
      $region50: #{tpu_custom_call.1} parent=5 // pred_check_branch
        %330 = sbr.rel (%p327) target = $region52
      $region51: #{tpu_custom_call.1} parent=5 // pred_region
        %s331 = ssub.s32 %s25, 1
        %s332 = sand.u32 %s38, 1
        %s333 = scalar_lea.sflag [#allocation4], %s332
        %s334 = sand.u32 %s38, 1
        %s335 = smul.addr %s334, 64
        %s336 = scalar_lea.vmem [#allocation3], %s335
        // Predicated region
        $region53: #{tpu_custom_call.1} parent=51 // pred_check
          %p337 = pneg %p51
        $region54: #{tpu_custom_call.1} parent=51 // pred_check_branch
          %339 = sbr.rel (%p337) target = $region56
        $region55: #{tpu_custom_call.1} parent=51 // pred_region
          %340 = dma.done %s333, 1024
        $region56: #{tpu_custom_call.1} parent=51 // pred_fallthru
          _
        %s341 = sand.u32 %s30, 1
        %s342 = scalar_lea.sflag [#allocation7], %s341
        %s343 = sand.u32 %s64, 1
        %s344 = smul.addr %s343, 8
        %s345 = scalar_lea.vmem [#allocation6], %s344
        // Predicated region
        $region57: #{tpu_custom_call.1} parent=51 // pred_check
          %p346 = pneg %p77
        $region58: #{tpu_custom_call.1} parent=51 // pred_check_branch
          %348 = sbr.rel (%p346) target = $region60
        $region59: #{tpu_custom_call.1} parent=51 // pred_region
          %349 = dma.done %s342, 128
        $region60: #{tpu_custom_call.1} parent=51 // pred_fallthru
          _
        // Predicated region
        $region61: #{tpu_custom_call.1} parent=51 // pred_check
          %p350 = pneg %p98
        $region62: #{tpu_custom_call.1} parent=51 // pred_check_branch
          %352 = sbr.rel (%p350) target = $region64
        $region63: #{tpu_custom_call.1} parent=51 // pred_region
          %353 = dma.done [#allocation7], 2048
        $region64: #{tpu_custom_call.1} parent=51 // pred_fallthru
          _
        // Predicated region
        $region65: #{tpu_custom_call.1} parent=51 // pred_check
          %p354 = pneg %p140
        $region66: #{tpu_custom_call.1} parent=51 // pred_check_branch
          %356 = sbr.rel (%p354) target = $region68
        $region67: #{tpu_custom_call.1} parent=51 // pred_region
          %357 = dma.done [#allocation10], 2048
        $region68: #{tpu_custom_call.1} parent=51 // pred_fallthru
          _
        %s358 = sand.u32 %s38, 1
        %s359 = scalar_lea.sflag [#allocation4], %s358
        %s360 = sand.u32 %s38, 1
        %s361 = smul.addr %s360, 64
        %s362 = scalar_lea.vmem [#allocation3], %s361
        %p363 = pneg %p51
        %p364 = pneg %p48
        %s365 = sand.u32 %s30, 1
        %s366 = scalar_lea.sflag [#allocation7], %s365
        %s367 = sand.u32 %s64, 1
        %s368 = smul.addr %s367, 8
        %s369 = scalar_lea.vmem [#allocation6], %s368
        %p370 = pneg %p77
        %p371 = pneg %p74
        %p372 = pneg %p98
        %p373 = pneg %p95
        %p374 = pneg %p119
        %p375 = pneg %p116
        %p376 = pneg %p140
        %p377 = pneg %p137
        %p378 = pneg %p161
        %p379 = pneg %p158
        %p380 = pneg %p182
        %p381 = pneg %p179
        %p382 = pneg %p203
        %p383 = pneg %p200
        %p384 = pneg %p229
        %p385 = pneg %p226
        %s386 = sand.u32 %s216, 1
        %s387 = scalar_lea.sflag [#allocation5], %s386
        %s388 = sand.u32 %s216, 1
        %s389 = smul.addr %s388, 8
        %s390 = scalar_lea.vmem [#allocation11], %s389
        %s391 = smul.u32 8, %s30
        %v392 = vld [vmem:[%s336] sm:$0xff]
        %v393 = vld [vmem:[%s336 + $0x8] sm:$0xff]
        %v394 = vld [vmem:[%s336 + $0x10] sm:$0xff]
        %v395 = vld [vmem:[%s336 + $0x18] sm:$0xff]
        %v396 = vld [vmem:[%s336 + $0x20] sm:$0xff]
        %v397 = vld [vmem:[%s336 + $0x28] sm:$0xff]
        %v398 = vld [vmem:[%s336 + $0x30] sm:$0xff]
        %v399 = vld [vmem:[%s336 + $0x38] sm:$0xff]
        %v400 = vld [vmem:[#allocation8] sm:$0xff]
        %v401 = vld [vmem:[#allocation8 + $0x8] sm:$0xff]
        %v402 = vld [vmem:[#allocation8 + $0x10] sm:$0xff]
        %v403 = vld [vmem:[#allocation8 + $0x18] sm:$0xff]
        %v404 = vld [vmem:[#allocation8 + $0x20] sm:$0xff]
        %v405 = vld [vmem:[#allocation8 + $0x28] sm:$0xff]
        %v406 = vld [vmem:[#allocation8 + $0x30] sm:$0xff]
        %v407 = vld [vmem:[#allocation8 + $0x38] sm:$0xff]
        %v408 = vld [vmem:[#allocation8 + $0x40] sm:$0xff]
        %v409 = vld [vmem:[#allocation8 + $0x48] sm:$0xff]
        %v410 = vld [vmem:[#allocation8 + $0x50] sm:$0xff]
        %v411 = vld [vmem:[#allocation8 + $0x58] sm:$0xff]
        %v412 = vld [vmem:[#allocation8 + $0x60] sm:$0xff]
        %v413 = vld [vmem:[#allocation8 + $0x68] sm:$0xff]
        %v414 = vld [vmem:[#allocation8 + $0x70] sm:$0xff]
        %v415 = vld [vmem:[#allocation8 + $0x78] sm:$0xff]
        %v416 = vld [vmem:[%s3] sm:$0x1]
        %v418 = vlaneseq
        %v419 = vshrl.u32 %v418, 7
        %v420 = vsub.s32 0, %v419
        %v421 = vrot.slane %v416, %v420
        %423 = vmatprep.subr.mxu0 0.0
        %424 = vmatpush1.msra.mxu0 %v400
        %425 = vmatprep.subr.mxu0 0.0
        %426 = vmatpush1.msra.mxu0 %v401
        %427 = vmatprep.subr.mxu0 0.0
        %428 = vmatpush1.msra.mxu0 %v402
        %429 = vmatprep.subr.mxu0 0.0
        %430 = vmatpush1.msra.mxu0 %v403
        %431 = vmatprep.subr.mxu0 0.0
        %432 = vmatpush1.msra.mxu0 %v404
        %433 = vmatprep.subr.mxu0 0.0
        %434 = vmatpush1.msra.mxu0 %v405
        %435 = vmatprep.subr.mxu0 0.0
        %436 = vmatpush1.msra.mxu0 %v406
        %437 = vmatprep.subr.mxu0 0.0
        %438 = vmatpush1.msra.mxu0 %v407
        %439 = vmatprep.subr.mxu0 0.0
        %440 = vmatpush1.msra.mxu0 %v408
        %441 = vmatprep.subr.mxu0 0.0
        %442 = vmatpush1.msra.mxu0 %v409
        %443 = vmatprep.subr.mxu0 0.0
        %444 = vmatpush1.msra.mxu0 %v410
        %445 = vmatprep.subr.mxu0 0.0
        %446 = vmatpush1.msra.mxu0 %v411
        %447 = vmatprep.subr.mxu0 0.0
        %448 = vmatpush1.msra.mxu0 %v412
        %449 = vmatprep.subr.mxu0 0.0
        %450 = vmatpush1.msra.mxu0 %v413
        %451 = vmatprep.subr.mxu0 0.0
        %452 = vmatpush1.msra.mxu0 %v414
        %453 = vmatprep.subr.mxu0 0.0
        %454 = vmatpush1.msra.mxu0 %v415
        %455 = vmatprep.subr.mxu0 0.0
        %456 = vmatpush1.msra.mxu0 0.0
        %457 = vmatprep.subr.mxu0 0.0
        %458 = vmatpush1.msra.mxu0 0.0
        %459 = vmatprep.subr.mxu0 0.0
        %460 = vmatpush1.msra.mxu0 0.0
        %461 = vmatprep.subr.mxu0 0.0
        %462 = vmatpush1.msra.mxu0 0.0
        %463 = vmatprep.subr.mxu0 0.0
        %464 = vmatpush1.msra.mxu0 0.0
        %465 = vmatprep.subr.mxu0 0.0
        %466 = vmatpush1.msra.mxu0 0.0
        %467 = vmatprep.subr.mxu0 0.0
        %468 = vmatpush1.msra.mxu0 0.0
        %469 = vmatprep.subr.mxu0 0.0
        %470 = vmatpush1.msra.mxu0 0.0
        %471 = vmatprep.subr.mxu0 0.0
        %472 = vmatpush1.msra.mxu0 0.0
        %473 = vmatprep.subr.mxu0 0.0
        %474 = vmatpush1.msra.mxu0 0.0
        %475 = vmatprep.subr.mxu0 0.0
        %476 = vmatpush1.msra.mxu0 0.0
        %477 = vmatprep.subr.mxu0 0.0
        %478 = vmatpush1.msra.mxu0 0.0
        %479 = vmatprep.subr.mxu0 0.0
        %480 = vmatpush1.msra.mxu0 0.0
        %481 = vmatprep.subr.mxu0 0.0
        %482 = vmatpush1.msra.mxu0 0.0
        %483 = vmatprep.subr.mxu0 0.0
        %484 = vmatpush1.msra.mxu0 0.0
        %485 = vmatprep.subr.mxu0 0.0
        %486 = vmatpush1.msra.mxu0 0.0
        %487 = vmatprep.mubr.f32.mxu0 0.0
        %488 = vmatmul.mubr.f32.gmra.mrb[0].mxu0 %v392
        %v489 = vpop.f32.mrb[0].mxu0
        %v490 = vadd.f32 %v421, %v489
        %v491 = vpop.f32.mrb[0].mxu0
        %492 = vmatprep.mubr.f32.mxu0 0.0
        %493 = vmatmul.mubr.f32.gmra.mrb[0].mxu0 %v393
        %v494 = vpop.f32.mrb[0].mxu0
        %v495 = vadd.f32 %v421, %v494
        %v496 = vpop.f32.mrb[0].mxu0
        %497 = vmatprep.mubr.f32.mxu0 0.0
        %498 = vmatmul.mubr.f32.gmra.mrb[0].mxu0 %v394
        %v499 = vpop.f32.mrb[0].mxu0
        %v500 = vadd.f32 %v421, %v499
        %v501 = vpop.f32.mrb[0].mxu0
        %502 = vmatprep.mubr.f32.mxu0 0.0
        %503 = vmatmul.mubr.f32.gmra.mrb[0].mxu0 %v395
        %v504 = vpop.f32.mrb[0].mxu0
        %v505 = vadd.f32 %v421, %v504
        %v506 = vpop.f32.mrb[0].mxu0
        %507 = vmatprep.mubr.f32.mxu0 0.0
        %508 = vmatmul.mubr.f32.gmra.mrb[0].mxu0 %v396
        %v509 = vpop.f32.mrb[0].mxu0
        %v510 = vadd.f32 %v421, %v509
        %v511 = vpop.f32.mrb[0].mxu0
        %512 = vmatprep.mubr.f32.mxu0 0.0
        %513 = vmatmul.mubr.f32.gmra.mrb[0].mxu0 %v397
        %v514 = vpop.f32.mrb[0].mxu0
        %v515 = vadd.f32 %v421, %v514
        %v516 = vpop.f32.mrb[0].mxu0
        %517 = vmatprep.mubr.f32.mxu0 0.0
        %518 = vmatmul.mubr.f32.gmra.mrb[0].mxu0 %v398
        %v519 = vpop.f32.mrb[0].mxu0
        %v520 = vadd.f32 %v421, %v519
        %v521 = vpop.f32.mrb[0].mxu0
        %522 = vmatprep.mubr.f32.mxu0 0.0
        %523 = vmatmul.mubr.f32.gmra.mrb[0].mxu0 %v399
        %v524 = vpop.f32.mrb[0].mxu0
        %v525 = vadd.f32 %v421, %v524
        %v526 = vpop.f32.mrb[0].mxu0
        %527 = vdwg.mxu0
        %v528 = vtanh.pop %v490
        %v529 = vtanh.pop %v495
        %v530 = vtanh.pop %v500
        %v531 = vtanh.pop %v505
        %v532 = vtanh.pop %v510
        %v533 = vtanh.pop %v515
        %v534 = vtanh.pop %v520
        %v535 = vtanh.pop %v525
        %v536 = vld [vmem:[%s345] sm:$0xff]
        %v537 = vld [vmem:[#allocation9] sm:$0xff]
        %v538 = vld [vmem:[#allocation9 + $0x8] sm:$0xff]
        %v539 = vld [vmem:[#allocation9 + $0x10] sm:$0xff]
        %v540 = vld [vmem:[#allocation9 + $0x18] sm:$0xff]
        %v541 = vld [vmem:[#allocation9 + $0x20] sm:$0xff]
        %v542 = vld [vmem:[#allocation9 + $0x28] sm:$0xff]
        %v543 = vld [vmem:[#allocation9 + $0x30] sm:$0xff]
        %v544 = vld [vmem:[#allocation9 + $0x38] sm:$0xff]
        %v545 = vld [vmem:[#allocation9 + $0x40] sm:$0xff]
        %v546 = vld [vmem:[#allocation9 + $0x48] sm:$0xff]
        %v547 = vld [vmem:[#allocation9 + $0x50] sm:$0xff]
        %v548 = vld [vmem:[#allocation9 + $0x58] sm:$0xff]
        %v549 = vld [vmem:[#allocation9 + $0x60] sm:$0xff]
        %v550 = vld [vmem:[#allocation9 + $0x68] sm:$0xff]
        %v551 = vld [vmem:[#allocation9 + $0x70] sm:$0xff]
        %v552 = vld [vmem:[#allocation9 + $0x78] sm:$0xff]
        %v553 = vld [vmem:[%s5] sm:$0x1]
        %v555 = vlaneseq
        %v556 = vshrl.u32 %v555, 7
        %v557 = vsub.s32 0, %v556
        %v558 = vrot.slane %v553, %v557
        %560 = vmatprep.subr.mxu0 0.0
        %561 = vmatpush1.msra.mxu0 %v537
        %562 = vmatprep.subr.mxu0 0.0
        %563 = vmatpush1.msra.mxu0 %v538
        %564 = vmatprep.subr.mxu0 0.0
        %565 = vmatpush1.msra.mxu0 %v539
        %566 = vmatprep.subr.mxu0 0.0
        %567 = vmatpush1.msra.mxu0 %v540
        %568 = vmatprep.subr.mxu0 0.0
        %569 = vmatpush1.msra.mxu0 %v541
        %570 = vmatprep.subr.mxu0 0.0
        %571 = vmatpush1.msra.mxu0 %v542
        %572 = vmatprep.subr.mxu0 0.0
        %573 = vmatpush1.msra.mxu0 %v543
        %574 = vmatprep.subr.mxu0 0.0
        %575 = vmatpush1.msra.mxu0 %v544
        %576 = vmatprep.subr.mxu0 0.0
        %577 = vmatpush1.msra.mxu0 %v545
        %578 = vmatprep.subr.mxu0 0.0
        %579 = vmatpush1.msra.mxu0 %v546
        %580 = vmatprep.subr.mxu0 0.0
        %581 = vmatpush1.msra.mxu0 %v547
        %582 = vmatprep.subr.mxu0 0.0
        %583 = vmatpush1.msra.mxu0 %v548
        %584 = vmatprep.subr.mxu0 0.0
        %585 = vmatpush1.msra.mxu0 %v549
        %586 = vmatprep.subr.mxu0 0.0
        %587 = vmatpush1.msra.mxu0 %v550
        %588 = vmatprep.subr.mxu0 0.0
        %589 = vmatpush1.msra.mxu0 %v551
        %590 = vmatprep.subr.mxu0 0.0
        %591 = vmatpush1.msra.mxu0 %v552
        %592 = vmatprep.subr.mxu0 0.0
        %593 = vmatpush1.msra.mxu0 0.0
        %594 = vmatprep.subr.mxu0 0.0
        %595 = vmatpush1.msra.mxu0 0.0
        %596 = vmatprep.subr.mxu0 0.0
        %597 = vmatpush1.msra.mxu0 0.0
        %598 = vmatprep.subr.mxu0 0.0
        %599 = vmatpush1.msra.mxu0 0.0
        %600 = vmatprep.subr.mxu0 0.0
        %601 = vmatpush1.msra.mxu0 0.0
        %602 = vmatprep.subr.mxu0 0.0
        %603 = vmatpush1.msra.mxu0 0.0
        %604 = vmatprep.subr.mxu0 0.0
        %605 = vmatpush1.msra.mxu0 0.0
        %606 = vmatprep.subr.mxu0 0.0
        %607 = vmatpush1.msra.mxu0 0.0
        %608 = vmatprep.subr.mxu0 0.0
        %609 = vmatpush1.msra.mxu0 0.0
        %610 = vmatprep.subr.mxu0 0.0
        %611 = vmatpush1.msra.mxu0 0.0
        %612 = vmatprep.subr.mxu0 0.0
        %613 = vmatpush1.msra.mxu0 0.0
        %614 = vmatprep.subr.mxu0 0.0
        %615 = vmatpush1.msra.mxu0 0.0
        %616 = vmatprep.subr.mxu0 0.0
        %617 = vmatpush1.msra.mxu0 0.0
        %618 = vmatprep.subr.mxu0 0.0
        %619 = vmatpush1.msra.mxu0 0.0
        %620 = vmatprep.subr.mxu0 0.0
        %621 = vmatpush1.msra.mxu0 0.0
        %622 = vmatprep.subr.mxu0 0.0
        %623 = vmatpush1.msra.mxu0 0.0
        %624 = vmatprep.mubr.f32.mxu0 0.0
        %625 = vmatmul.mubr.f32.gmra.mrb[0].mxu0 %v536
        %v626 = vpop.f32.mrb[0].mxu0
        %v627 = vadd.f32 %v558, %v626
        %v628 = vpop.f32.mrb[0].mxu0
        %629 = vdwg.mxu0
        %v630 = vtanh.pop %v627
        %v631 = vld [vmem:[%s6] sm:$0x1]
        %v633 = vlaneseq
        %v634 = vshrl.u32 %v633, 7
        %v635 = vsub.s32 0, %v634
        %v636 = vrot.slane %v631, %v635
        %v638 = vmul.f32 %v630, %v636
        %v640 = vcombine.high %v638, %v638
        %v642 = vunpack.c.l.s4 1966171168
        %v643 = vunpack.c.0.s8 %v642
        %v644 = vlaneseq
        %v645 = vshrl.u32 %v644, 7
        %v646 = vsub.s32 %v643, %v645
        %v647 = vrot.slane %v638, %v646
        %v649 = vunpack.c.l.s4 1966171168
        %v650 = vunpack.c.0.s8 %v649
        %v651 = vlaneseq
        %v652 = vshrl.u32 %v651, 7
        %v653 = vsub.s32 %v650, %v652
        %v654 = vrot.slane %v640, %v653
        %v655 = vcombine.high %v647, %v647
        %v656 = vcombine.high %v654, %v654
        %v658 = vunpack.c.l.s4 1966171168
        %v659 = vunpack.c.0.s8 %v658
        %v660 = vlaneseq
        %v661 = vshrl.u32 %v660, 7
        %v662 = vsub.s32 %v659, %v661
        %v663 = vrot.slane %v647, %v662
        %v665 = vunpack.c.l.s4 1966171168
        %v666 = vunpack.c.0.s8 %v665
        %v667 = vlaneseq
        %v668 = vshrl.u32 %v667, 7
        %v669 = vsub.s32 %v666, %v668
        %v670 = vrot.slane %v654, %v669
        %v672 = vunpack.c.l.s4 1966171168
        %v673 = vunpack.c.0.s8 %v672
        %v674 = vlaneseq
        %v675 = vshrl.u32 %v674, 7
        %v676 = vsub.s32 %v673, %v675
        %v677 = vrot.slane %v655, %v676
        %v679 = vunpack.c.l.s4 1966171168
        %v680 = vunpack.c.0.s8 %v679
        %v681 = vlaneseq
        %v682 = vshrl.u32 %v681, 7
        %v683 = vsub.s32 %v680, %v682
        %v684 = vrot.slane %v656, %v683
        %v685 = vcombine.high %v663, %v663
        %v686 = vcombine.high %v670, %v670
        %v687 = vcombine.high %v677, %v677
        %v688 = vcombine.high %v684, %v684
        %v689 = vlaneseq
        %v690 = vshrl.u32 %v689, 7
        %v691 = vsub.s32 0, %v690
        %v692 = vrot.slane %v663, %v691
        %v693 = vlaneseq
        %v694 = vshrl.u32 %v693, 7
        %v695 = vsub.s32 0, %v694
        %v696 = vrot.slane %v677, %v695
        %v697 = vlaneseq
        %v698 = vshrl.u32 %v697, 7
        %v699 = vsub.s32 0, %v698
        %v700 = vrot.slane %v685, %v699
        %v701 = vlaneseq
        %v702 = vshrl.u32 %v701, 7
        %v703 = vsub.s32 0, %v702
        %v704 = vrot.slane %v687, %v703
        %v705 = vlaneseq
        %v706 = vshrl.u32 %v705, 7
        %v707 = vsub.s32 0, %v706
        %v708 = vrot.slane %v670, %v707
        %v709 = vlaneseq
        %v710 = vshrl.u32 %v709, 7
        %v711 = vsub.s32 0, %v710
        %v712 = vrot.slane %v684, %v711
        %v713 = vlaneseq
        %v714 = vshrl.u32 %v713, 7
        %v715 = vsub.s32 0, %v714
        %v716 = vrot.slane %v686, %v715
        %v717 = vlaneseq
        %v718 = vshrl.u32 %v717, 7
        %v719 = vsub.s32 0, %v718
        %v720 = vrot.slane %v688, %v719
        %v729 = vmul.f32 %v528, %v692
        %v730 = vmul.f32 %v529, %v696
        %v731 = vmul.f32 %v530, %v700
        %v732 = vmul.f32 %v531, %v704
        %v733 = vmul.f32 %v532, %v708
        %v734 = vmul.f32 %v533, %v712
        %v735 = vmul.f32 %v534, %v716
        %v736 = vmul.f32 %v535, %v720
        %737 = vadd.xlane.f32.xlu0 %v729
        %v738 = vpop.xlane.xlu0 %737
        %739 = vadd.xlane.f32.xlu0 %v730
        %v740 = vpop.xlane.xlu0 %739
        %741 = vadd.xlane.f32.xlu0 %v731
        %v742 = vpop.xlane.xlu0 %741
        %743 = vadd.xlane.f32.xlu0 %v732
        %v744 = vpop.xlane.xlu0 %743
        %745 = vadd.xlane.f32.xlu0 %v733
        %v746 = vpop.xlane.xlu0 %745
        %747 = vadd.xlane.f32.xlu0 %v734
        %v748 = vpop.xlane.xlu0 %747
        %749 = vadd.xlane.f32.xlu0 %v735
        %v750 = vpop.xlane.xlu0 %749
        %751 = vadd.xlane.f32.xlu0 %v736
        %v752 = vpop.xlane.xlu0 %751
        %s753 = sld [smem:[#allocation2]]
        %v754 = vstv %s753
        %v755 = vadd.f32 %v738, %v754
        %v756 = vadd.f32 %v740, %v754
        %v757 = vadd.f32 %v742, %v754
        %v758 = vadd.f32 %v744, %v754
        %v759 = vadd.f32 %v746, %v754
        %v760 = vadd.f32 %v748, %v754
        %v761 = vadd.f32 %v750, %v754
        %v762 = vadd.f32 %v752, %v754
        %v771 = vlaneseq
        %v772 = vand.u32 %v771, 127
        %v773 = vlaneseq
        %v774 = vshrl.u32 %v773, 7
        %v775 = vsub.s32 %v772, %v774
        %v776 = vrot.slane %v755, %v775
        %v777 = vlaneseq
        %v778 = vshrl.u32 %v777, 7
        %v779 = vsub.s32 %v772, %v778
        %v780 = vrot.slane %v756, %v779
        %v781 = vlaneseq
        %v782 = vshrl.u32 %v781, 7
        %v783 = vsub.s32 %v772, %v782
        %v784 = vrot.slane %v757, %v783
        %v785 = vlaneseq
        %v786 = vshrl.u32 %v785, 7
        %v787 = vsub.s32 %v772, %v786
        %v788 = vrot.slane %v758, %v787
        %v789 = vlaneseq
        %v790 = vshrl.u32 %v789, 7
        %v791 = vsub.s32 %v772, %v790
        %v792 = vrot.slane %v759, %v791
        %v793 = vlaneseq
        %v794 = vshrl.u32 %v793, 7
        %v795 = vsub.s32 %v772, %v794
        %v796 = vrot.slane %v760, %v795
        %v797 = vlaneseq
        %v798 = vshrl.u32 %v797, 7
        %v799 = vsub.s32 %v772, %v798
        %v800 = vrot.slane %v761, %v799
        %v801 = vlaneseq
        %v802 = vshrl.u32 %v801, 7
        %v803 = vsub.s32 %v772, %v802
        %v804 = vrot.slane %v762, %v803
        %vm805 = vcmask 1041409
        %v806 = vsel %vm805, %v780, %v776
        %vm807 = vcmask 1042434
        %v808 = vsel %vm807, %v784, %v806
        %vm809 = vcmask 1043459
        %v810 = vsel %vm809, %v788, %v808
        %vm811 = vcmask 1044484
        %v812 = vsel %vm811, %v792, %v810
        %vm813 = vcmask 1045509
        %v814 = vsel %vm813, %v796, %v812
        %vm815 = vcmask 1046534
        %v816 = vsel %vm815, %v800, %v814
        %vm817 = vcmask 1047559
        %v818 = vsel %vm817, %v804, %v816
        %vm820 = vcmask 64512
        %v821 = vsel %vm820, %v818, -inf
        %822 = vmax.xlane.f32.xlu0 %v821
        %v823 = vpop.xlane.xlu0 %822
        %v825 = vlaneseq
        %v826 = vshrl.u32 %v825, 7
        %v827 = vsub.s32 0, %v826
        %v828 = vrot.slane %v823, %v827
        %v829 = vlaneseq
        %v830 = vshrl.u32 %v829, 7
        %v831 = vsub.s32 1, %v830
        %v832 = vrot.slane %v823, %v831
        %v833 = vlaneseq
        %v834 = vshrl.u32 %v833, 7
        %v835 = vsub.s32 2, %v834
        %v836 = vrot.slane %v823, %v835
        %v837 = vlaneseq
        %v838 = vshrl.u32 %v837, 7
        %v839 = vsub.s32 3, %v838
        %v840 = vrot.slane %v823, %v839
        %v841 = vlaneseq
        %v842 = vshrl.u32 %v841, 7
        %v843 = vsub.s32 4, %v842
        %v844 = vrot.slane %v823, %v843
        %v845 = vlaneseq
        %v846 = vshrl.u32 %v845, 7
        %v847 = vsub.s32 5, %v846
        %v848 = vrot.slane %v823, %v847
        %v849 = vlaneseq
        %v850 = vshrl.u32 %v849, 7
        %v851 = vsub.s32 6, %v850
        %v852 = vrot.slane %v823, %v851
        %v853 = vlaneseq
        %v854 = vshrl.u32 %v853, 7
        %v855 = vsub.s32 7, %v854
        %v856 = vrot.slane %v823, %v855
        %v865 = vsub.f32 %v755, %v828
        %v866 = vsub.f32 %v756, %v832
        %v867 = vsub.f32 %v757, %v836
        %v868 = vsub.f32 %v758, %v840
        %v869 = vsub.f32 %v759, %v844
        %v870 = vsub.f32 %v760, %v848
        %v871 = vsub.f32 %v761, %v852
        %v872 = vsub.f32 %v762, %v856
        %v873 = vmul.f32 %v865, 1.442695
        %v874 = vpow.pop %v873
        %v875 = vmul.f32 %v866, 1.442695
        %v876 = vpow.pop %v875
        %v877 = vmul.f32 %v867, 1.442695
        %v878 = vpow.pop %v877
        %v879 = vmul.f32 %v868, 1.442695
        %v880 = vpow.pop %v879
        %v881 = vmul.f32 %v869, 1.442695
        %v882 = vpow.pop %v881
        %v883 = vmul.f32 %v870, 1.442695
        %v884 = vpow.pop %v883
        %v885 = vmul.f32 %v871, 1.442695
        %v886 = vpow.pop %v885
        %v887 = vmul.f32 %v872, 1.442695
        %v888 = vpow.pop %v887
        %890 = vset.pattern.permute.xlu0 0
        %891 = vperm.xlu0 %890, %v874
        %v892 = vpop.permute.xlu0 %891
        %895 = vset.pattern.permute.xlu0 0
        %896 = vperm.xlu0 %895, %v876
        %v897 = vpop.permute.xlu0 %896
        %900 = vset.pattern.permute.xlu0 0
        %901 = vperm.xlu0 %900, %v878
        %v902 = vpop.permute.xlu0 %901
        %905 = vset.pattern.permute.xlu0 0
        %906 = vperm.xlu0 %905, %v880
        %v907 = vpop.permute.xlu0 %906
        %910 = vset.pattern.permute.xlu0 0
        %911 = vperm.xlu0 %910, %v882
        %v912 = vpop.permute.xlu0 %911
        %915 = vset.pattern.permute.xlu0 0
        %916 = vperm.xlu0 %915, %v884
        %v917 = vpop.permute.xlu0 %916
        %920 = vset.pattern.permute.xlu0 0
        %921 = vperm.xlu0 %920, %v886
        %v922 = vpop.permute.xlu0 %921
        %925 = vset.pattern.permute.xlu0 0
        %926 = vperm.xlu0 %925, %v888
        %v927 = vpop.permute.xlu0 %926
        %v929 = vmul.f32 %v892, %v392
        %v930 = vmul.f32 %v897, %v393
        %v931 = vmul.f32 %v902, %v394
        %v932 = vmul.f32 %v907, %v395
        %v933 = vmul.f32 %v912, %v396
        %v934 = vmul.f32 %v917, %v397
        %v935 = vmul.f32 %v922, %v398
        %v936 = vmul.f32 %v927, %v399
        %v937 = vrot.slane %v929, 4
        %v938 = vadd.f32 %v929, %v937
        %v939 = vrot.slane %v938, 2
        %v940 = vadd.f32 %v938, %v939
        %v941 = vrot.slane %v940, 1
        %v942 = vadd.f32 %v940, %v941
        %v943 = vrot.slane %v930, 4
        %v944 = vadd.f32 %v930, %v943
        %v945 = vrot.slane %v944, 2
        %v946 = vadd.f32 %v944, %v945
        %v947 = vrot.slane %v946, 1
        %v948 = vadd.f32 %v946, %v947
        %v949 = vrot.slane %v931, 4
        %v950 = vadd.f32 %v931, %v949
        %v951 = vrot.slane %v950, 2
        %v952 = vadd.f32 %v950, %v951
        %v953 = vrot.slane %v952, 1
        %v954 = vadd.f32 %v952, %v953
        %v955 = vrot.slane %v932, 4
        %v956 = vadd.f32 %v932, %v955
        %v957 = vrot.slane %v956, 2
        %v958 = vadd.f32 %v956, %v957
        %v959 = vrot.slane %v958, 1
        %v960 = vadd.f32 %v958, %v959
        %v961 = vrot.slane %v933, 4
        %v962 = vadd.f32 %v933, %v961
        %v963 = vrot.slane %v962, 2
        %v964 = vadd.f32 %v962, %v963
        %v965 = vrot.slane %v964, 1
        %v966 = vadd.f32 %v964, %v965
        %v967 = vrot.slane %v934, 4
        %v968 = vadd.f32 %v934, %v967
        %v969 = vrot.slane %v968, 2
        %v970 = vadd.f32 %v968, %v969
        %v971 = vrot.slane %v970, 1
        %v972 = vadd.f32 %v970, %v971
        %v973 = vrot.slane %v935, 4
        %v974 = vadd.f32 %v935, %v973
        %v975 = vrot.slane %v974, 2
        %v976 = vadd.f32 %v974, %v975
        %v977 = vrot.slane %v976, 1
        %v978 = vadd.f32 %v976, %v977
        %v979 = vrot.slane %v936, 4
        %v980 = vadd.f32 %v936, %v979
        %v981 = vrot.slane %v980, 2
        %v982 = vadd.f32 %v980, %v981
        %v983 = vrot.slane %v982, 1
        %v984 = vadd.f32 %v982, %v983
        %v985 = vmul.f32 %v942, %v942
        %v986 = vmul.f32 %v948, %v948
        %v987 = vmul.f32 %v954, %v954
        %v988 = vmul.f32 %v960, %v960
        %v989 = vmul.f32 %v966, %v966
        %v990 = vmul.f32 %v972, %v972
        %v991 = vmul.f32 %v978, %v978
        %v992 = vmul.f32 %v984, %v984
        %v1001 = vsel %vm805, %v986, %v985
        %v1002 = vsel %vm807, %v987, %v1001
        %v1003 = vsel %vm809, %v988, %v1002
        %v1004 = vsel %vm811, %v989, %v1003
        %v1005 = vsel %vm813, %v990, %v1004
        %v1006 = vsel %vm815, %v991, %v1005
        %v1007 = vsel %vm817, %v992, %v1006
        %1009 = vadd.xlane.f32.xlu0 %v1007
        %v1010 = vpop.xlane.xlu0 %1009
        %v1011 = vadd.f32 %v1010, 1e-12
        %v1012 = vrsqrt.pop %v1011
        %v1014 = vrot.slane %v1012, 1
        %v1015 = vrot.slane %v1012, 2
        %v1016 = vrot.slane %v1012, 3
        %v1017 = vrot.slane %v1012, 4
        %v1018 = vrot.slane %v1012, 5
        %v1019 = vrot.slane %v1012, 6
        %v1020 = vrot.slane %v1012, 7
        %v1029 = vmul.f32 %v942, %v1012
        %v1030 = vmul.f32 %v948, %v1014
        %v1031 = vmul.f32 %v954, %v1015
        %v1032 = vmul.f32 %v960, %v1016
        %v1033 = vmul.f32 %v966, %v1017
        %v1034 = vmul.f32 %v972, %v1018
        %v1035 = vmul.f32 %v978, %v1019
        %v1036 = vmul.f32 %v984, %v1020
        %v1045 = vrot.slane %v1030, 7
        %v1046 = vsel %vm805, %v1045, %v1029
        %v1047 = vrot.slane %v1031, 6
        %v1048 = vsel %vm807, %v1047, %v1046
        %v1049 = vrot.slane %v1032, 5
        %v1050 = vsel %vm809, %v1049, %v1048
        %v1051 = vrot.slane %v1033, 4
        %v1052 = vsel %vm811, %v1051, %v1050
        %v1053 = vrot.slane %v1034, 3
        %v1054 = vsel %vm813, %v1053, %v1052
        %v1055 = vrot.slane %v1035, 2
        %v1056 = vsel %vm815, %v1055, %v1054
        %v1057 = vrot.slane %v1036, 1
        %v1058 = vsel %vm817, %v1057, %v1056
        %1060 = vst [vmem:[%s390] sm:$0xff] %v1058
        %s1061 = sand.u32 %s216, 1
        %s1062 = scalar_lea.sflag [#allocation5], %s1061
        %s1063 = sand.u32 %s216, 1
        %s1064 = smul.addr %s1063, 8
        %s1065 = scalar_lea.vmem [#allocation11], %s1064
        // Predicated region
        $region69: #{tpu_custom_call.1} parent=51 // pred_check
          %p1066 = pneg %p226
        $region70: #{tpu_custom_call.1} parent=51 // pred_check_branch
          %1068 = sbr.rel (%p1066) target = $region72
        $region71: #{tpu_custom_call.1} parent=51 // pred_region
          %s1070 = ssub.s32 128, 128
          %1071 = vsyncadd %s1062, %s1070
          %s1072 = smul.addr %s30, 128
          %s1073 = scalar_lea.hbm %s8, %s1072
          %s1075 = sshll.u32 %s1065, 4
          %s1076 = int_to_ptr.vmem [resolvable:$true] %s1075
          %1078 = dma.vmem_to_hbm [thread:$0]  %s1076, 128, %s1073, %s1062
        $region72: #{tpu_custom_call.1} parent=51 // pred_fallthru
          _
      $region52: #{tpu_custom_call.1} parent=5 // pred_fallthru
        _
      %p1079 = scmp.le.s32.totalorder 2, %s25
      // Predicated region
      $region73: #{tpu_custom_call.1} parent=5 // pred_check
        %p1080 = pneg %p1079
      $region74: #{tpu_custom_call.1} parent=5 // pred_check_branch
        %1082 = sbr.rel (%p1080) target = $region76
      $region75: #{tpu_custom_call.1} parent=5 // pred_region
        %s1083 = ssub.s32 %s25, 2
        // Predicated region
        $region77: #{tpu_custom_call.1} parent=75 // pred_check
          %p1084 = pneg %p232
        $region78: #{tpu_custom_call.1} parent=75 // pred_check_branch
          %1086 = sbr.rel (%p1084) target = $region80
        $region79: #{tpu_custom_call.1} parent=75 // pred_region
          %s1087 = sand.u32 %s217, 1
          %s1088 = scalar_lea.sflag [#allocation5], %s1087
          %s1089 = sand.u32 %s217, 1
          %s1090 = smul.addr %s1089, 8
          %s1091 = scalar_lea.vmem [#allocation11], %s1090
          %1092 = dma.done %s1088, 128
        $region80: #{tpu_custom_call.1} parent=75 // pred_fallthru
          _
      $region76: #{tpu_custom_call.1} parent=5 // pred_fallthru
        _
    $region6: #{tpu_custom_call.1} parent=1 // loop_footer
      %s29 = sadd.s32 1, %s25
    $region7: #{tpu_custom_call.1} parent=1 // loop_footer_branch
      %24 = sbr.rel target = $region3
    $region8: #{tpu_custom_call.1} parent=1 // loop_exit
      _
    %1093 = vsyncpa [#allocation4], 1
    %s1094 = scalar_lea.sflag [#allocation4], 1
    %1095 = vsyncpa %s1094, 1
    %1096 = vsyncpa [#allocation7], 1
    %s1097 = scalar_lea.sflag [#allocation7], 1
    %1098 = vsyncpa %s1097, 1
    %1099 = vsyncpa [#allocation10], 1
    %1100 = vsyncpa [#allocation5], 1
    %s1101 = scalar_lea.sflag [#allocation5], 1
    %1102 = vsyncpa %s1101, 1

// kernel: tpu_custom_call.1
$region0: #{tpu_custom_call.1}
  #allocation0 [shape = 'u32[]', space=smem, size = 0x4, offset = 0x4, fixed_abs, tag = 'smem constant byte address 0x4 - core index']
  #allocation1 [shape = 'u32[144,128]{1,0:T(1,128)}', space=vmem, size = 0x12000, scoped, tag = 'internal scratch']
  #allocation2 [shape = 'f32[1]{0:T(128)S(6)}', space=smem, size = 0x200, scoped, tag = 'scoped memory for tpu_custom_call.1']
  %s0 = inlined_call_operand.hbm [shape: f32[16,8,128], index: 0, kind: input, shape index: {}]
  %s1 = inlined_call_operand.hbm [shape: f32[16,128], index: 1, kind: input, shape index: {}]
  %s2 = inlined_call_operand.hbm [shape: f32[128,128], index: 2, kind: input, shape index: {}]
  %s3 = inlined_call_operand.vmem [shape: f32[1,128], index: 3, kind: input, shape index: {}]
  %s4 = inlined_call_operand.hbm [shape: f32[128,128], index: 4, kind: input, shape index: {}]
  %s5 = inlined_call_operand.vmem [shape: f32[1,128], index: 5, kind: input, shape index: {}]
  %s6 = inlined_call_operand.vmem [shape: f32[1,128], index: 6, kind: input, shape index: {}]
  %s7 = inlined_call_operand.<no memory space> [shape: f32[1], index: 7, kind: input, shape index: {}]
  %s8 = inlined_call_operand.hbm [shape: f32[16,128], index: 8, kind: output, shape index: {}]
  %s9 = sld [smem:[#allocation0]]
  $region81: #{tpu_custom_call.1} parent=0
    _
  %s11 = ssub.s32 1, %s9
  %s12 = scalar_select 0, %s11, %s9
  %13 = sst [smem:[#allocation2]] %s7
  $region1: #{tpu_custom_call.1} parent=0
    #allocation3 [shape = 'u8[65536]{0}', space=vmem, size = 0x10000, scoped, tag = 'input window, operand 0']
    #allocation4 [shape = 's32[2]{0}', space=sflag, size = 0x8, scoped, tag = 'scoped memory for tpu_custom_call.1']
    #allocation5 [shape = 's32[2]{0}', space=sflag, size = 0x8, scoped, tag = 'scoped memory for tpu_custom_call.1']
    #allocation6 [shape = 'u8[8192]{0}', space=vmem, size = 0x2000, scoped, tag = 'input window, operand 1']
    #allocation7 [shape = 's32[2]{0}', space=sflag, size = 0x8, scoped, tag = 'scoped memory for tpu_custom_call.1']
    #allocation8 [shape = 'u8[65536]{0}', space=vmem, size = 0x10000, scoped, tag = 'input window, operand 2, single buffered']
    #allocation9 [shape = 'u8[65536]{0}', space=vmem, size = 0x10000, scoped, tag = 'input window, operand 4, single buffered']
    #allocation10 [shape = 's32[1]{0}', space=sflag, size = 0x4, scoped, tag = 'scoped memory for tpu_custom_call.1']
    #allocation11 [shape = 'u8[8192]{0}', space=vmem, size = 0x2000, scoped, tag = 'output window, operand 0']
    %14 = vsyncpa [#allocation4], 0
    %s15 = scalar_lea.sflag [#allocation4], 1
    %16 = vsyncpa %s15, 0
    %17 = vsyncpa [#allocation7], 0
    %s18 = scalar_lea.sflag [#allocation7], 1
    %19 = vsyncpa %s18, 0
    %20 = vsyncpa [#allocation10], 0
    %21 = vsyncpa [#allocation5], 0
    %s22 = scalar_lea.sflag [#allocation5], 1
    %23 = vsyncpa %s22, 0
    loop: start=0, step=1, limit=4
    $region2: #{tpu_custom_call.1} parent=1 // loop_pre_header
      _
    $region3: #{tpu_custom_call.1} parent=1 // loop_header
      %s25 = sphi 0, %s29
      %p26 = scmp.ge.s32.totalorder %s25, 4
      %s35 = sphi 0, %s37
      %s38 = sphi 0, %s35
      %s39 = sphi 0, %s38
      %s55 = sphi 0, %s39
      %s61 = sphi 0, %s63
      %s64 = sphi 0, %s61
      %s65 = sphi 0, %s64
      %s81 = sphi 0, %s65
      %s85 = sphi 0, %s85
      %s87 = sphi 0, %s85
      %s88 = sphi 0, %s87
      %s102 = sphi 0, %s88
      %s106 = sphi 0, %s106
      %s108 = sphi 0, %s106
      %s109 = sphi 0, %s108
      %s123 = sphi 0, %s109
      %s127 = sphi 0, %s127
      %s129 = sphi 0, %s127
      %s130 = sphi 0, %s129
      %s144 = sphi 0, %s130
      %s148 = sphi 0, %s148
      %s150 = sphi 0, %s148
      %s151 = sphi 0, %s150
      %s165 = sphi 0, %s151
      %s169 = sphi 0, %s169
      %s171 = sphi 0, %s169
      %s172 = sphi 0, %s171
      %s186 = sphi 0, %s172
      %s190 = sphi 0, %s190
      %s192 = sphi 0, %s190
      %s193 = sphi 0, %s192
      %s207 = sphi 0, %s193
      %s213 = sphi 0, %s215
      %s216 = sphi 0, %s213
      %s217 = sphi 0, %s216
      %s233 = sphi 0, %s217
    $region4: #{tpu_custom_call.1} parent=1 // loop_header_branch
      %28 = sbr.rel (%p26) target = $region8
    $region5: #{tpu_custom_call.1} parent=1 // loop_body
      %s30 = ssub.s32 %s25, 1
      %s31 = ssub.s32 %s25, 2
      %s32 = sadd.s32 %s25, 1
      %s33 = ssub.s32 %s25, %s32
      %p34 = scmp.eq.s32.totalorder %s33, 0
      %s36 = sadd.s32 %s35, 1
      %s37 = scalar_select %p34, %s35, %s36
      %p40 = pneg %p34
      %p41 = scmp.eq.s32.totalorder %s25, 1
      %p42 = por %p40, %p41
      %p43 = scmp.ne.s32.totalorder %s35, %s38
      %p44 = scmp.eq.s32.totalorder %s25, 0
      %p45 = por %p43, %p44
      %p46 = scmp.ne.s32.totalorder %s35, %s38
      %p47 = scmp.eq.s32.totalorder %s30, 1
      %p48 = por %p46, %p47
      %p49 = scmp.ne.s32.totalorder %s38, %s39
      %p50 = scmp.eq.s32.totalorder %s30, 0
      %p51 = por %p49, %p50
      %p52 = scmp.ne.s32.totalorder %s38, %s39
      %p53 = scmp.eq.s32.totalorder %s31, 1
      %p54 = por %p52, %p53
      %p56 = scmp.ne.s32.totalorder %s39, %s55
      %p57 = scmp.eq.s32.totalorder %s31, 0
      %p58 = por %p56, %p57
      %s59 = ssub.s32 %s25, %s32
      %p60 = scmp.eq.s32.totalorder %s59, 0
      %s62 = sadd.s32 %s61, 1
      %s63 = scalar_select %p60, %s61, %s62
      %p66 = pneg %p60
      %p67 = scmp.eq.s32.totalorder %s25, 1
      %p68 = por %p66, %p67
      %p69 = scmp.ne.s32.totalorder %s61, %s64
      %p70 = scmp.eq.s32.totalorder %s25, 0
      %p71 = por %p69, %p70
      %p72 = scmp.ne.s32.totalorder %s61, %s64
      %p73 = scmp.eq.s32.totalorder %s30, 1
      %p74 = por %p72, %p73
      %p75 = scmp.ne.s32.totalorder %s64, %s65
      %p76 = scmp.eq.s32.totalorder %s30, 0
      %p77 = por %p75, %p76
      %p78 = scmp.ne.s32.totalorder %s64, %s65
      %p79 = scmp.eq.s32.totalorder %s31, 1
      %p80 = por %p78, %p79
      %p82 = scmp.ne.s32.totalorder %s65, %s81
      %p83 = scmp.eq.s32.totalorder %s31, 0
      %p84 = por %p82, %p83
      %s86 = sadd.s32 %s85, 1
      %p89 = scmp.eq.s32.totalorder %s25, 1
      %p90 = scmp.ne.s32.totalorder %s85, %s87
      %p91 = scmp.eq.s32.totalorder %s25, 0
      %p92 = por %p90, %p91
      %p93 = scmp.ne.s32.totalorder %s85, %s87
      %p94 = scmp.eq.s32.totalorder %s30, 1
      %p95 = por %p93, %p94
      %p96 = scmp.ne.s32.totalorder %s87, %s88
      %p97 = scmp.eq.s32.totalorder %s30, 0
      %p98 = por %p96, %p97
      %p99 = scmp.ne.s32.totalorder %s87, %s88
      %p100 = scmp.eq.s32.totalorder %s31, 1
      %p101 = por %p99, %p100
      %p103 = scmp.ne.s32.totalorder %s88, %s102
      %p104 = scmp.eq.s32.totalorder %s31, 0
      %p105 = por %p103, %p104
      %s107 = sadd.s32 %s106, 1
      %p110 = scmp.eq.s32.totalorder %s25, 1
      %p111 = scmp.ne.s32.totalorder %s106, %s108
      %p112 = scmp.eq.s32.totalorder %s25, 0
      %p113 = por %p111, %p112
      %p114 = scmp.ne.s32.totalorder %s106, %s108
      %p115 = scmp.eq.s32.totalorder %s30, 1
      %p116 = por %p114, %p115
      %p117 = scmp.ne.s32.totalorder %s108, %s109
      %p118 = scmp.eq.s32.totalorder %s30, 0
      %p119 = por %p117, %p118
      %p120 = scmp.ne.s32.totalorder %s108, %s109
      %p121 = scmp.eq.s32.totalorder %s31, 1
      %p122 = por %p120, %p121
      %p124 = scmp.ne.s32.totalorder %s109, %s123
      %p125 = scmp.eq.s32.totalorder %s31, 0
      %p126 = por %p124, %p125
      %s128 = sadd.s32 %s127, 1
      %p131 = scmp.eq.s32.totalorder %s25, 1
      %p132 = scmp.ne.s32.totalorder %s127, %s129
      %p133 = scmp.eq.s32.totalorder %s25, 0
      %p134 = por %p132, %p133
      %p135 = scmp.ne.s32.totalorder %s127, %s129
      %p136 = scmp.eq.s32.totalorder %s30, 1
      %p137 = por %p135, %p136
      %p138 = scmp.ne.s32.totalorder %s129, %s130
      %p139 = scmp.eq.s32.totalorder %s30, 0
      %p140 = por %p138, %p139
      %p141 = scmp.ne.s32.totalorder %s129, %s130
      %p142 = scmp.eq.s32.totalorder %s31, 1
      %p143 = por %p141, %p142
      %p145 = scmp.ne.s32.totalorder %s130, %s144
      %p146 = scmp.eq.s32.totalorder %s31, 0
      %p147 = por %p145, %p146
      %s149 = sadd.s32 %s148, 1
      %p152 = scmp.eq.s32.totalorder %s25, 1
      %p153 = scmp.ne.s32.totalorder %s148, %s150
      %p154 = scmp.eq.s32.totalorder %s25, 0
      %p155 = por %p153, %p154
      %p156 = scmp.ne.s32.totalorder %s148, %s150
      %p157 = scmp.eq.s32.totalorder %s30, 1
      %p158 = por %p156, %p157
      %p159 = scmp.ne.s32.totalorder %s150, %s151
      %p160 = scmp.eq.s32.totalorder %s30, 0
      %p161 = por %p159, %p160
      %p162 = scmp.ne.s32.totalorder %s150, %s151
      %p163 = scmp.eq.s32.totalorder %s31, 1
      %p164 = por %p162, %p163
      %p166 = scmp.ne.s32.totalorder %s151, %s165
      %p167 = scmp.eq.s32.totalorder %s31, 0
      %p168 = por %p166, %p167
      %s170 = sadd.s32 %s169, 1
      %p173 = scmp.eq.s32.totalorder %s25, 1
      %p174 = scmp.ne.s32.totalorder %s169, %s171
      %p175 = scmp.eq.s32.totalorder %s25, 0
      %p176 = por %p174, %p175
      %p177 = scmp.ne.s32.totalorder %s169, %s171
      %p178 = scmp.eq.s32.totalorder %s30, 1
      %p179 = por %p177, %p178
      %p180 = scmp.ne.s32.totalorder %s171, %s172
      %p181 = scmp.eq.s32.totalorder %s30, 0
      %p182 = por %p180, %p181
      %p183 = scmp.ne.s32.totalorder %s171, %s172
      %p184 = scmp.eq.s32.totalorder %s31, 1
      %p185 = por %p183, %p184
      %p187 = scmp.ne.s32.totalorder %s172, %s186
      %p188 = scmp.eq.s32.totalorder %s31, 0
      %p189 = por %p187, %p188
      %s191 = sadd.s32 %s190, 1
      %p194 = scmp.eq.s32.totalorder %s25, 1
      %p195 = scmp.ne.s32.totalorder %s190, %s192
      %p196 = scmp.eq.s32.totalorder %s25, 0
      %p197 = por %p195, %p196
      %p198 = scmp.ne.s32.totalorder %s190, %s192
      %p199 = scmp.eq.s32.totalorder %s30, 1
      %p200 = por %p198, %p199
      %p201 = scmp.ne.s32.totalorder %s192, %s193
      %p202 = scmp.eq.s32.totalorder %s30, 0
      %p203 = por %p201, %p202
      %p204 = scmp.ne.s32.totalorder %s192, %s193
      %p205 = scmp.eq.s32.totalorder %s31, 1
      %p206 = por %p204, %p205
      %p208 = scmp.ne.s32.totalorder %s193, %s207
      %p209 = scmp.eq.s32.totalorder %s31, 0
      %p210 = por %p208, %p209
      %s211 = ssub.s32 %s25, %s32
      %p212 = scmp.eq.s32.totalorder %s211, 0
      %s214 = sadd.s32 %s213, 1
      %s215 = scalar_select %p212, %s213, %s214
      %p218 = pneg %p212
      %p219 = scmp.eq.s32.totalorder %s25, 1
      %p220 = por %p218, %p219
      %p221 = scmp.ne.s32.totalorder %s213, %s216
      %p222 = scmp.eq.s32.totalorder %s25, 0
      %p223 = por %p221, %p222
      %p224 = scmp.ne.s32.totalorder %s213, %s216
      %p225 = scmp.eq.s32.totalorder %s30, 1
      %p226 = por %p224, %p225
      %p227 = scmp.ne.s32.totalorder %s216, %s217
      %p228 = scmp.eq.s32.totalorder %s30, 0
      %p229 = por %p227, %p228
      %p230 = scmp.ne.s32.totalorder %s216, %s217
      %p231 = scmp.eq.s32.totalorder %s31, 1
      %p232 = por %p230, %p231
      %p234 = scmp.ne.s32.totalorder %s217, %s233
      %p235 = scmp.eq.s32.totalorder %s31, 0
      %p236 = por %p234, %p235
      %p237 = scmp.le.s32.totalorder 1, %s25
      %p238 = scmp.lt.s32.totalorder %s25, 3
      %p239 = pnand %p237, %p238
      %p240 = pneg %p239
      // Predicated region
      $region9: #{tpu_custom_call.1} parent=5 // pred_check
        _
      $region10: #{tpu_custom_call.1} parent=5 // pred_check_branch
        %242 = sbr.rel (%p239) target = $region12
      $region11: #{tpu_custom_call.1} parent=5 // pred_region
        %s243 = ssub.s32 %s25, 1
        // Predicated region
        $region13: #{tpu_custom_call.1} parent=11 // pred_check
          %p244 = pneg %p98
        $region14: #{tpu_custom_call.1} parent=11 // pred_check_branch
          %246 = sbr.rel (%p244) target = $region16
        $region15: #{tpu_custom_call.1} parent=11 // pred_region
          %s248 = ssub.s32 2048, 2048
          %249 = vsyncadd [#allocation7], %s248
          %s250 = sshll.u32 [#allocation8], 4
          %s251 = int_to_ptr.vmem [resolvable:$true] %s250
          %256 = dma.hbm_to_vmem [thread:$0]  %s2, 2048, %s251, [#allocation7], 128, 128, 8
        $region16: #{tpu_custom_call.1} parent=11 // pred_fallthru
          _
        // Predicated region
        $region17: #{tpu_custom_call.1} parent=11 // pred_check
          %p257 = pneg %p119
        $region18: #{tpu_custom_call.1} parent=11 // pred_check_branch
          %259 = sbr.rel (%p257) target = $region20
        $region19: #{tpu_custom_call.1} parent=11 // pred_region
          _
        $region20: #{tpu_custom_call.1} parent=11 // pred_fallthru
          _
        // Predicated region
        $region21: #{tpu_custom_call.1} parent=11 // pred_check
          %p260 = pneg %p140
        $region22: #{tpu_custom_call.1} parent=11 // pred_check_branch
          %262 = sbr.rel (%p260) target = $region24
        $region23: #{tpu_custom_call.1} parent=11 // pred_region
          %s264 = ssub.s32 2048, 2048
          %265 = vsyncadd [#allocation10], %s264
          %s266 = sshll.u32 [#allocation9], 4
          %s267 = int_to_ptr.vmem [resolvable:$true] %s266
          %272 = dma.hbm_to_vmem [thread:$0]  %s4, 2048, %s267, [#allocation10], 128, 128, 8
        $region24: #{tpu_custom_call.1} parent=11 // pred_fallthru
          _
        // Predicated region
        $region25: #{tpu_custom_call.1} parent=11 // pred_check
          %p273 = pneg %p161
        $region26: #{tpu_custom_call.1} parent=11 // pred_check_branch
          %275 = sbr.rel (%p273) target = $region28
        $region27: #{tpu_custom_call.1} parent=11 // pred_region
          _
        $region28: #{tpu_custom_call.1} parent=11 // pred_fallthru
          _
        // Predicated region
        $region29: #{tpu_custom_call.1} parent=11 // pred_check
          %p276 = pneg %p182
        $region30: #{tpu_custom_call.1} parent=11 // pred_check_branch
          %278 = sbr.rel (%p276) target = $region32
        $region31: #{tpu_custom_call.1} parent=11 // pred_region
          _
        $region32: #{tpu_custom_call.1} parent=11 // pred_fallthru
          _
        // Predicated region
        $region33: #{tpu_custom_call.1} parent=11 // pred_check
          %p279 = pneg %p203
        $region34: #{tpu_custom_call.1} parent=11 // pred_check_branch
          %281 = sbr.rel (%p279) target = $region36
        $region35: #{tpu_custom_call.1} parent=11 // pred_region
          _
        $region36: #{tpu_custom_call.1} parent=11 // pred_fallthru
          _
      $region12: #{tpu_custom_call.1} parent=5 // pred_fallthru
        _
      %p282 = scmp.lt.s32.totalorder %s25, 2
      // Predicated region
      $region37: #{tpu_custom_call.1} parent=5 // pred_check
        %p283 = pneg %p282
      $region38: #{tpu_custom_call.1} parent=5 // pred_check_branch
        %285 = sbr.rel (%p283) target = $region40
      $region39: #{tpu_custom_call.1} parent=5 // pred_region
        // Predicated region
        $region41: #{tpu_custom_call.1} parent=39 // pred_check
          %p286 = pneg %p45
        $region42: #{tpu_custom_call.1} parent=39 // pred_check_branch
          %288 = sbr.rel (%p286) target = $region44
        $region43: #{tpu_custom_call.1} parent=39 // pred_region
          %s289 = sand.u32 %s35, 1
          %s290 = scalar_lea.sflag [#allocation4], %s289
          %s291 = sand.u32 %s35, 1
          %s292 = smul.addr %s291, 64
          %s293 = scalar_lea.vmem [#allocation3], %s292
          %s294 = smul.u32 8, %s25
          %s296 = ssub.s32 1024, 1024
          %297 = vsyncadd %s290, %s296
          %s298 = smul.addr %s294, 128
          %s299 = scalar_lea.hbm %s0, %s298
          %s300 = sshll.u32 %s293, 4
          %s301 = int_to_ptr.vmem [resolvable:$true] %s300
          %306 = dma.hbm_to_vmem [thread:$0]  %s299, 1024, %s301, %s290, 128, 128, 8
        $region44: #{tpu_custom_call.1} parent=39 // pred_fallthru
          _
        // Predicated region
        $region45: #{tpu_custom_call.1} parent=39 // pred_check
          %p307 = pneg %p71
        $region46: #{tpu_custom_call.1} parent=39 // pred_check_branch
          %309 = sbr.rel (%p307) target = $region48
        $region47: #{tpu_custom_call.1} parent=39 // pred_region
          %s310 = sand.u32 %s25, 1
          %s311 = scalar_lea.sflag [#allocation7], %s310
          %s312 = sand.u32 %s61, 1
          %s313 = smul.addr %s312, 8
          %s314 = scalar_lea.vmem [#allocation6], %s313
          %s316 = ssub.s32 128, 128
          %317 = vsyncadd %s311, %s316
          %s318 = smul.addr %s25, 128
          %s319 = scalar_lea.hbm %s1, %s318
          %s321 = sshll.u32 %s314, 4
          %s322 = int_to_ptr.vmem [resolvable:$true] %s321
          %324 = dma.hbm_to_vmem [thread:$0]  %s319, 128, %s322, %s311
        $region48: #{tpu_custom_call.1} parent=39 // pred_fallthru
          _
      $region40: #{tpu_custom_call.1} parent=5 // pred_fallthru
        _
      %p325 = scmp.le.s32.totalorder 1, %s25
      %p326 = scmp.lt.s32.totalorder %s25, 3
      %p327 = pnand %p325, %p326
      %p328 = pneg %p327
      // Predicated region
      $region49: #{tpu_custom_call.1} parent=5 // pred_check
        _
      $region50: #{tpu_custom_call.1} parent=5 // pred_check_branch
        %330 = sbr.rel (%p327) target = $region52
      $region51: #{tpu_custom_call.1} parent=5 // pred_region
        %s331 = ssub.s32 %s25, 1
        %s332 = sand.u32 %s38, 1
        %s333 = scalar_lea.sflag [#allocation4], %s332
        %s334 = sand.u32 %s38, 1
        %s335 = smul.addr %s334, 64
        %s336 = scalar_lea.vmem [#allocation3], %s335
        // Predicated region
        $region53: #{tpu_custom_call.1} parent=51 // pred_check
          %p337 = pneg %p51
        $region54: #{tpu_custom_call.1} parent=51 // pred_check_branch
          %339 = sbr.rel (%p337) target = $region56
        $region55: #{tpu_custom_call.1} parent=51 // pred_region
          %340 = dma.done %s333, 1024
        $region56: #{tpu_custom_call.1} parent=51 // pred_fallthru
          _
        %s341 = sand.u32 %s30, 1
        %s342 = scalar_lea.sflag [#allocation7], %s341
        %s343 = sand.u32 %s64, 1
        %s344 = smul.addr %s343, 8
        %s345 = scalar_lea.vmem [#allocation6], %s344
        // Predicated region
        $region57: #{tpu_custom_call.1} parent=51 // pred_check
          %p346 = pneg %p77
        $region58: #{tpu_custom_call.1} parent=51 // pred_check_branch
          %348 = sbr.rel (%p346) target = $region60
        $region59: #{tpu_custom_call.1} parent=51 // pred_region
          %349 = dma.done %s342, 128
        $region60: #{tpu_custom_call.1} parent=51 // pred_fallthru
          _
        // Predicated region
        $region61: #{tpu_custom_call.1} parent=51 // pred_check
          %p350 = pneg %p98
        $region62: #{tpu_custom_call.1} parent=51 // pred_check_branch
          %352 = sbr.rel (%p350) target = $region64
        $region63: #{tpu_custom_call.1} parent=51 // pred_region
          %353 = dma.done [#allocation7], 2048
        $region64: #{tpu_custom_call.1} parent=51 // pred_fallthru
          _
        // Predicated region
        $region65: #{tpu_custom_call.1} parent=51 // pred_check
          %p354 = pneg %p140
        $region66: #{tpu_custom_call.1} parent=51 // pred_check_branch
          %356 = sbr.rel (%p354) target = $region68
        $region67: #{tpu_custom_call.1} parent=51 // pred_region
          %357 = dma.done [#allocation10], 2048
        $region68: #{tpu_custom_call.1} parent=51 // pred_fallthru
          _
        %s358 = sand.u32 %s38, 1
        %s359 = scalar_lea.sflag [#allocation4], %s358
        %s360 = sand.u32 %s38, 1
        %s361 = smul.addr %s360, 64
        %s362 = scalar_lea.vmem [#allocation3], %s361
        %p363 = pneg %p51
        %p364 = pneg %p48
        %s365 = sand.u32 %s30, 1
        %s366 = scalar_lea.sflag [#allocation7], %s365
        %s367 = sand.u32 %s64, 1
        %s368 = smul.addr %s367, 8
        %s369 = scalar_lea.vmem [#allocation6], %s368
        %p370 = pneg %p77
        %p371 = pneg %p74
        %p372 = pneg %p98
        %p373 = pneg %p95
        %p374 = pneg %p119
        %p375 = pneg %p116
        %p376 = pneg %p140
        %p377 = pneg %p137
        %p378 = pneg %p161
        %p379 = pneg %p158
        %p380 = pneg %p182
        %p381 = pneg %p179
        %p382 = pneg %p203
        %p383 = pneg %p200
        %p384 = pneg %p229
        %p385 = pneg %p226
        %s386 = sand.u32 %s216, 1
        %s387 = scalar_lea.sflag [#allocation5], %s386
        %s388 = sand.u32 %s216, 1
        %s389 = smul.addr %s388, 8
        %s390 = scalar_lea.vmem [#allocation11], %s389
        %s391 = smul.u32 8, %s30
        %v392 = vld [vmem:[%s336] sm:$0xff]
        %v393 = vld [vmem:[%s336 + $0x8] sm:$0xff]
        %v394 = vld [vmem:[%s336 + $0x10] sm:$0xff]
        %v395 = vld [vmem:[%s336 + $0x18] sm:$0xff]
        %v396 = vld [vmem:[%s336 + $0x20] sm:$0xff]
        %v397 = vld [vmem:[%s336 + $0x28] sm:$0xff]
        %v398 = vld [vmem:[%s336 + $0x30] sm:$0xff]
        %v399 = vld [vmem:[%s336 + $0x38] sm:$0xff]
        %v400 = vld [vmem:[#allocation8] sm:$0xff]
        %v401 = vld [vmem:[#allocation8 + $0x8] sm:$0xff]
        %v402 = vld [vmem:[#allocation8 + $0x10] sm:$0xff]
        %v403 = vld [vmem:[#allocation8 + $0x18] sm:$0xff]
        %v404 = vld [vmem:[#allocation8 + $0x20] sm:$0xff]
        %v405 = vld [vmem:[#allocation8 + $0x28] sm:$0xff]
        %v406 = vld [vmem:[#allocation8 + $0x30] sm:$0xff]
        %v407 = vld [vmem:[#allocation8 + $0x38] sm:$0xff]
        %v408 = vld [vmem:[#allocation8 + $0x40] sm:$0xff]
        %v409 = vld [vmem:[#allocation8 + $0x48] sm:$0xff]
        %v410 = vld [vmem:[#allocation8 + $0x50] sm:$0xff]
        %v411 = vld [vmem:[#allocation8 + $0x58] sm:$0xff]
        %v412 = vld [vmem:[#allocation8 + $0x60] sm:$0xff]
        %v413 = vld [vmem:[#allocation8 + $0x68] sm:$0xff]
        %v414 = vld [vmem:[#allocation8 + $0x70] sm:$0xff]
        %v415 = vld [vmem:[#allocation8 + $0x78] sm:$0xff]
        %v416 = vld [vmem:[%s3] sm:$0x1]
        %v418 = vlaneseq
        %v419 = vshrl.u32 %v418, 7
        %v420 = vsub.s32 0, %v419
        %v421 = vrot.slane %v416, %v420
        %423 = vmatprep.subr.mxu0 0.0
        %424 = vmatpush1.msra.mxu0 %v400
        %425 = vmatprep.subr.mxu0 0.0
        %426 = vmatpush1.msra.mxu0 %v401
        %427 = vmatprep.subr.mxu0 0.0
        %428 = vmatpush1.msra.mxu0 %v402
        %429 = vmatprep.subr.mxu0 0.0
        %430 = vmatpush1.msra.mxu0 %v403
        %431 = vmatprep.subr.mxu0 0.0
        %432 = vmatpush1.msra.mxu0 %v404
        %433 = vmatprep.subr.mxu0 0.0
        %434 = vmatpush1.msra.mxu0 %v405
        %435 = vmatprep.subr.mxu0 0.0
        %436 = vmatpush1.msra.mxu0 %v406
        %437 = vmatprep.subr.mxu0 0.0
        %438 = vmatpush1.msra.mxu0 %v407
        %439 = vmatprep.subr.mxu0 0.0
        %440 = vmatpush1.msra.mxu0 %v408
        %441 = vmatprep.subr.mxu0 0.0
        %442 = vmatpush1.msra.mxu0 %v409
        %443 = vmatprep.subr.mxu0 0.0
        %444 = vmatpush1.msra.mxu0 %v410
        %445 = vmatprep.subr.mxu0 0.0
        %446 = vmatpush1.msra.mxu0 %v411
        %447 = vmatprep.subr.mxu0 0.0
        %448 = vmatpush1.msra.mxu0 %v412
        %449 = vmatprep.subr.mxu0 0.0
        %450 = vmatpush1.msra.mxu0 %v413
        %451 = vmatprep.subr.mxu0 0.0
        %452 = vmatpush1.msra.mxu0 %v414
        %453 = vmatprep.subr.mxu0 0.0
        %454 = vmatpush1.msra.mxu0 %v415
        %455 = vmatprep.subr.mxu0 0.0
        %456 = vmatpush1.msra.mxu0 0.0
        %457 = vmatprep.subr.mxu0 0.0
        %458 = vmatpush1.msra.mxu0 0.0
        %459 = vmatprep.subr.mxu0 0.0
        %460 = vmatpush1.msra.mxu0 0.0
        %461 = vmatprep.subr.mxu0 0.0
        %462 = vmatpush1.msra.mxu0 0.0
        %463 = vmatprep.subr.mxu0 0.0
        %464 = vmatpush1.msra.mxu0 0.0
        %465 = vmatprep.subr.mxu0 0.0
        %466 = vmatpush1.msra.mxu0 0.0
        %467 = vmatprep.subr.mxu0 0.0
        %468 = vmatpush1.msra.mxu0 0.0
        %469 = vmatprep.subr.mxu0 0.0
        %470 = vmatpush1.msra.mxu0 0.0
        %471 = vmatprep.subr.mxu0 0.0
        %472 = vmatpush1.msra.mxu0 0.0
        %473 = vmatprep.subr.mxu0 0.0
        %474 = vmatpush1.msra.mxu0 0.0
        %475 = vmatprep.subr.mxu0 0.0
        %476 = vmatpush1.msra.mxu0 0.0
        %477 = vmatprep.subr.mxu0 0.0
        %478 = vmatpush1.msra.mxu0 0.0
        %479 = vmatprep.subr.mxu0 0.0
        %480 = vmatpush1.msra.mxu0 0.0
        %481 = vmatprep.subr.mxu0 0.0
        %482 = vmatpush1.msra.mxu0 0.0
        %483 = vmatprep.subr.mxu0 0.0
        %484 = vmatpush1.msra.mxu0 0.0
        %485 = vmatprep.subr.mxu0 0.0
        %486 = vmatpush1.msra.mxu0 0.0
        %487 = vmatprep.mubr.f32.mxu0 0.0
        %488 = vmatmul.mubr.f32.gmra.mrb[0].mxu0 %v392
        %v489 = vpop.f32.mrb[0].mxu0
        %v490 = vadd.f32 %v421, %v489
        %v491 = vpop.f32.mrb[0].mxu0
        %492 = vmatprep.mubr.f32.mxu0 0.0
        %493 = vmatmul.mubr.f32.gmra.mrb[0].mxu0 %v393
        %v494 = vpop.f32.mrb[0].mxu0
        %v495 = vadd.f32 %v421, %v494
        %v496 = vpop.f32.mrb[0].mxu0
        %497 = vmatprep.mubr.f32.mxu0 0.0
        %498 = vmatmul.mubr.f32.gmra.mrb[0].mxu0 %v394
        %v499 = vpop.f32.mrb[0].mxu0
        %v500 = vadd.f32 %v421, %v499
        %v501 = vpop.f32.mrb[0].mxu0
        %502 = vmatprep.mubr.f32.mxu0 0.0
        %503 = vmatmul.mubr.f32.gmra.mrb[0].mxu0 %v395
        %v504 = vpop.f32.mrb[0].mxu0
        %v505 = vadd.f32 %v421, %v504
        %v506 = vpop.f32.mrb[0].mxu0
        %507 = vmatprep.mubr.f32.mxu0 0.0
        %508 = vmatmul.mubr.f32.gmra.mrb[0].mxu0 %v396
        %v509 = vpop.f32.mrb[0].mxu0
        %v510 = vadd.f32 %v421, %v509
        %v511 = vpop.f32.mrb[0].mxu0
        %512 = vmatprep.mubr.f32.mxu0 0.0
        %513 = vmatmul.mubr.f32.gmra.mrb[0].mxu0 %v397
        %v514 = vpop.f32.mrb[0].mxu0
        %v515 = vadd.f32 %v421, %v514
        %v516 = vpop.f32.mrb[0].mxu0
        %517 = vmatprep.mubr.f32.mxu0 0.0
        %518 = vmatmul.mubr.f32.gmra.mrb[0].mxu0 %v398
        %v519 = vpop.f32.mrb[0].mxu0
        %v520 = vadd.f32 %v421, %v519
        %v521 = vpop.f32.mrb[0].mxu0
        %522 = vmatprep.mubr.f32.mxu0 0.0
        %523 = vmatmul.mubr.f32.gmra.mrb[0].mxu0 %v399
        %v524 = vpop.f32.mrb[0].mxu0
        %v525 = vadd.f32 %v421, %v524
        %v526 = vpop.f32.mrb[0].mxu0
        %527 = vdwg.mxu0
        %v528 = vtanh.pop %v490
        %v529 = vtanh.pop %v495
        %v530 = vtanh.pop %v500
        %v531 = vtanh.pop %v505
        %v532 = vtanh.pop %v510
        %v533 = vtanh.pop %v515
        %v534 = vtanh.pop %v520
        %v535 = vtanh.pop %v525
        %v536 = vld [vmem:[%s345] sm:$0xff]
        %v537 = vld [vmem:[#allocation9] sm:$0xff]
        %v538 = vld [vmem:[#allocation9 + $0x8] sm:$0xff]
        %v539 = vld [vmem:[#allocation9 + $0x10] sm:$0xff]
        %v540 = vld [vmem:[#allocation9 + $0x18] sm:$0xff]
        %v541 = vld [vmem:[#allocation9 + $0x20] sm:$0xff]
        %v542 = vld [vmem:[#allocation9 + $0x28] sm:$0xff]
        %v543 = vld [vmem:[#allocation9 + $0x30] sm:$0xff]
        %v544 = vld [vmem:[#allocation9 + $0x38] sm:$0xff]
        %v545 = vld [vmem:[#allocation9 + $0x40] sm:$0xff]
        %v546 = vld [vmem:[#allocation9 + $0x48] sm:$0xff]
        %v547 = vld [vmem:[#allocation9 + $0x50] sm:$0xff]
        %v548 = vld [vmem:[#allocation9 + $0x58] sm:$0xff]
        %v549 = vld [vmem:[#allocation9 + $0x60] sm:$0xff]
        %v550 = vld [vmem:[#allocation9 + $0x68] sm:$0xff]
        %v551 = vld [vmem:[#allocation9 + $0x70] sm:$0xff]
        %v552 = vld [vmem:[#allocation9 + $0x78] sm:$0xff]
        %v553 = vld [vmem:[%s5] sm:$0x1]
        %v555 = vlaneseq
        %v556 = vshrl.u32 %v555, 7
        %v557 = vsub.s32 0, %v556
        %v558 = vrot.slane %v553, %v557
        %560 = vmatprep.subr.mxu0 0.0
        %561 = vmatpush1.msra.mxu0 %v537
        %562 = vmatprep.subr.mxu0 0.0
        %563 = vmatpush1.msra.mxu0 %v538
        %564 = vmatprep.subr.mxu0 0.0
        %565 = vmatpush1.msra.mxu0 %v539
        %566 = vmatprep.subr.mxu0 0.0
        %567 = vmatpush1.msra.mxu0 %v540
        %568 = vmatprep.subr.mxu0 0.0
        %569 = vmatpush1.msra.mxu0 %v541
        %570 = vmatprep.subr.mxu0 0.0
        %571 = vmatpush1.msra.mxu0 %v542
        %572 = vmatprep.subr.mxu0 0.0
        %573 = vmatpush1.msra.mxu0 %v543
        %574 = vmatprep.subr.mxu0 0.0
        %575 = vmatpush1.msra.mxu0 %v544
        %576 = vmatprep.subr.mxu0 0.0
        %577 = vmatpush1.msra.mxu0 %v545
        %578 = vmatprep.subr.mxu0 0.0
        %579 = vmatpush1.msra.mxu0 %v546
        %580 = vmatprep.subr.mxu0 0.0
        %581 = vmatpush1.msra.mxu0 %v547
        %582 = vmatprep.subr.mxu0 0.0
        %583 = vmatpush1.msra.mxu0 %v548
        %584 = vmatprep.subr.mxu0 0.0
        %585 = vmatpush1.msra.mxu0 %v549
        %586 = vmatprep.subr.mxu0 0.0
        %587 = vmatpush1.msra.mxu0 %v550
        %588 = vmatprep.subr.mxu0 0.0
        %589 = vmatpush1.msra.mxu0 %v551
        %590 = vmatprep.subr.mxu0 0.0
        %591 = vmatpush1.msra.mxu0 %v552
        %592 = vmatprep.subr.mxu0 0.0
        %593 = vmatpush1.msra.mxu0 0.0
        %594 = vmatprep.subr.mxu0 0.0
        %595 = vmatpush1.msra.mxu0 0.0
        %596 = vmatprep.subr.mxu0 0.0
        %597 = vmatpush1.msra.mxu0 0.0
        %598 = vmatprep.subr.mxu0 0.0
        %599 = vmatpush1.msra.mxu0 0.0
        %600 = vmatprep.subr.mxu0 0.0
        %601 = vmatpush1.msra.mxu0 0.0
        %602 = vmatprep.subr.mxu0 0.0
        %603 = vmatpush1.msra.mxu0 0.0
        %604 = vmatprep.subr.mxu0 0.0
        %605 = vmatpush1.msra.mxu0 0.0
        %606 = vmatprep.subr.mxu0 0.0
        %607 = vmatpush1.msra.mxu0 0.0
        %608 = vmatprep.subr.mxu0 0.0
        %609 = vmatpush1.msra.mxu0 0.0
        %610 = vmatprep.subr.mxu0 0.0
        %611 = vmatpush1.msra.mxu0 0.0
        %612 = vmatprep.subr.mxu0 0.0
        %613 = vmatpush1.msra.mxu0 0.0
        %614 = vmatprep.subr.mxu0 0.0
        %615 = vmatpush1.msra.mxu0 0.0
        %616 = vmatprep.subr.mxu0 0.0
        %617 = vmatpush1.msra.mxu0 0.0
        %618 = vmatprep.subr.mxu0 0.0
        %619 = vmatpush1.msra.mxu0 0.0
        %620 = vmatprep.subr.mxu0 0.0
        %621 = vmatpush1.msra.mxu0 0.0
        %622 = vmatprep.subr.mxu0 0.0
        %623 = vmatpush1.msra.mxu0 0.0
        %624 = vmatprep.mubr.f32.mxu0 0.0
        %625 = vmatmul.mubr.f32.gmra.mrb[0].mxu0 %v536
        %v626 = vpop.f32.mrb[0].mxu0
        %v627 = vadd.f32 %v558, %v626
        %v628 = vpop.f32.mrb[0].mxu0
        %629 = vdwg.mxu0
        %v630 = vtanh.pop %v627
        %v631 = vld [vmem:[%s6] sm:$0x1]
        %v633 = vlaneseq
        %v634 = vshrl.u32 %v633, 7
        %v635 = vsub.s32 0, %v634
        %v636 = vrot.slane %v631, %v635
        %v638 = vmul.f32 %v630, %v636
        %v640 = vcombine.high %v638, %v638
        %v642 = vunpack.c.l.s4 1966171168
        %v643 = vunpack.c.0.s8 %v642
        %v644 = vlaneseq
        %v645 = vshrl.u32 %v644, 7
        %v646 = vsub.s32 %v643, %v645
        %v647 = vrot.slane %v638, %v646
        %v649 = vunpack.c.l.s4 1966171168
        %v650 = vunpack.c.0.s8 %v649
        %v651 = vlaneseq
        %v652 = vshrl.u32 %v651, 7
        %v653 = vsub.s32 %v650, %v652
        %v654 = vrot.slane %v640, %v653
        %v655 = vcombine.high %v647, %v647
        %v656 = vcombine.high %v654, %v654
        %v658 = vunpack.c.l.s4 1966171168
        %v659 = vunpack.c.0.s8 %v658
        %v660 = vlaneseq
        %v661 = vshrl.u32 %v660, 7
        %v662 = vsub.s32 %v659, %v661
        %v663 = vrot.slane %v647, %v662
        %v665 = vunpack.c.l.s4 1966171168
        %v666 = vunpack.c.0.s8 %v665
        %v667 = vlaneseq
        %v668 = vshrl.u32 %v667, 7
        %v669 = vsub.s32 %v666, %v668
        %v670 = vrot.slane %v654, %v669
        %v672 = vunpack.c.l.s4 1966171168
        %v673 = vunpack.c.0.s8 %v672
        %v674 = vlaneseq
        %v675 = vshrl.u32 %v674, 7
        %v676 = vsub.s32 %v673, %v675
        %v677 = vrot.slane %v655, %v676
        %v679 = vunpack.c.l.s4 1966171168
        %v680 = vunpack.c.0.s8 %v679
        %v681 = vlaneseq
        %v682 = vshrl.u32 %v681, 7
        %v683 = vsub.s32 %v680, %v682
        %v684 = vrot.slane %v656, %v683
        %v685 = vcombine.high %v663, %v663
        %v686 = vcombine.high %v670, %v670
        %v687 = vcombine.high %v677, %v677
        %v688 = vcombine.high %v684, %v684
        %v689 = vlaneseq
        %v690 = vshrl.u32 %v689, 7
        %v691 = vsub.s32 0, %v690
        %v692 = vrot.slane %v663, %v691
        %v693 = vlaneseq
        %v694 = vshrl.u32 %v693, 7
        %v695 = vsub.s32 0, %v694
        %v696 = vrot.slane %v677, %v695
        %v697 = vlaneseq
        %v698 = vshrl.u32 %v697, 7
        %v699 = vsub.s32 0, %v698
        %v700 = vrot.slane %v685, %v699
        %v701 = vlaneseq
        %v702 = vshrl.u32 %v701, 7
        %v703 = vsub.s32 0, %v702
        %v704 = vrot.slane %v687, %v703
        %v705 = vlaneseq
        %v706 = vshrl.u32 %v705, 7
        %v707 = vsub.s32 0, %v706
        %v708 = vrot.slane %v670, %v707
        %v709 = vlaneseq
        %v710 = vshrl.u32 %v709, 7
        %v711 = vsub.s32 0, %v710
        %v712 = vrot.slane %v684, %v711
        %v713 = vlaneseq
        %v714 = vshrl.u32 %v713, 7
        %v715 = vsub.s32 0, %v714
        %v716 = vrot.slane %v686, %v715
        %v717 = vlaneseq
        %v718 = vshrl.u32 %v717, 7
        %v719 = vsub.s32 0, %v718
        %v720 = vrot.slane %v688, %v719
        %v729 = vmul.f32 %v528, %v692
        %v730 = vmul.f32 %v529, %v696
        %v731 = vmul.f32 %v530, %v700
        %v732 = vmul.f32 %v531, %v704
        %v733 = vmul.f32 %v532, %v708
        %v734 = vmul.f32 %v533, %v712
        %v735 = vmul.f32 %v534, %v716
        %v736 = vmul.f32 %v535, %v720
        %737 = vadd.xlane.f32.xlu0 %v729
        %v738 = vpop.xlane.xlu0 %737
        %739 = vadd.xlane.f32.xlu0 %v730
        %v740 = vpop.xlane.xlu0 %739
        %741 = vadd.xlane.f32.xlu0 %v731
        %v742 = vpop.xlane.xlu0 %741
        %743 = vadd.xlane.f32.xlu0 %v732
        %v744 = vpop.xlane.xlu0 %743
        %745 = vadd.xlane.f32.xlu0 %v733
        %v746 = vpop.xlane.xlu0 %745
        %747 = vadd.xlane.f32.xlu0 %v734
        %v748 = vpop.xlane.xlu0 %747
        %749 = vadd.xlane.f32.xlu0 %v735
        %v750 = vpop.xlane.xlu0 %749
        %751 = vadd.xlane.f32.xlu0 %v736
        %v752 = vpop.xlane.xlu0 %751
        %s753 = sld [smem:[#allocation2]]
        %v754 = vstv %s753
        %v755 = vadd.f32 %v738, %v754
        %v756 = vadd.f32 %v740, %v754
        %v757 = vadd.f32 %v742, %v754
        %v758 = vadd.f32 %v744, %v754
        %v759 = vadd.f32 %v746, %v754
        %v760 = vadd.f32 %v748, %v754
        %v761 = vadd.f32 %v750, %v754
        %v762 = vadd.f32 %v752, %v754
        %v771 = vlaneseq
        %v772 = vand.u32 %v771, 127
        %v773 = vlaneseq
        %v774 = vshrl.u32 %v773, 7
        %v775 = vsub.s32 %v772, %v774
        %v776 = vrot.slane %v755, %v775
        %v777 = vlaneseq
        %v778 = vshrl.u32 %v777, 7
        %v779 = vsub.s32 %v772, %v778
        %v780 = vrot.slane %v756, %v779
        %v781 = vlaneseq
        %v782 = vshrl.u32 %v781, 7
        %v783 = vsub.s32 %v772, %v782
        %v784 = vrot.slane %v757, %v783
        %v785 = vlaneseq
        %v786 = vshrl.u32 %v785, 7
        %v787 = vsub.s32 %v772, %v786
        %v788 = vrot.slane %v758, %v787
        %v789 = vlaneseq
        %v790 = vshrl.u32 %v789, 7
        %v791 = vsub.s32 %v772, %v790
        %v792 = vrot.slane %v759, %v791
        %v793 = vlaneseq
        %v794 = vshrl.u32 %v793, 7
        %v795 = vsub.s32 %v772, %v794
        %v796 = vrot.slane %v760, %v795
        %v797 = vlaneseq
        %v798 = vshrl.u32 %v797, 7
        %v799 = vsub.s32 %v772, %v798
        %v800 = vrot.slane %v761, %v799
        %v801 = vlaneseq
        %v802 = vshrl.u32 %v801, 7
        %v803 = vsub.s32 %v772, %v802
        %v804 = vrot.slane %v762, %v803
        %vm805 = vcmask 1041409
        %v806 = vsel %vm805, %v780, %v776
        %vm807 = vcmask 1042434
        %v808 = vsel %vm807, %v784, %v806
        %vm809 = vcmask 1043459
        %v810 = vsel %vm809, %v788, %v808
        %vm811 = vcmask 1044484
        %v812 = vsel %vm811, %v792, %v810
        %vm813 = vcmask 1045509
        %v814 = vsel %vm813, %v796, %v812
        %vm815 = vcmask 1046534
        %v816 = vsel %vm815, %v800, %v814
        %vm817 = vcmask 1047559
        %v818 = vsel %vm817, %v804, %v816
        %vm820 = vcmask 64512
        %v821 = vsel %vm820, %v818, -inf
        %822 = vmax.xlane.f32.xlu0 %v821
        %v823 = vpop.xlane.xlu0 %822
        %v825 = vlaneseq
        %v826 = vshrl.u32 %v825, 7
        %v827 = vsub.s32 0, %v826
        %v828 = vrot.slane %v823, %v827
        %v829 = vlaneseq
        %v830 = vshrl.u32 %v829, 7
        %v831 = vsub.s32 1, %v830
        %v832 = vrot.slane %v823, %v831
        %v833 = vlaneseq
        %v834 = vshrl.u32 %v833, 7
        %v835 = vsub.s32 2, %v834
        %v836 = vrot.slane %v823, %v835
        %v837 = vlaneseq
        %v838 = vshrl.u32 %v837, 7
        %v839 = vsub.s32 3, %v838
        %v840 = vrot.slane %v823, %v839
        %v841 = vlaneseq
        %v842 = vshrl.u32 %v841, 7
        %v843 = vsub.s32 4, %v842
        %v844 = vrot.slane %v823, %v843
        %v845 = vlaneseq
        %v846 = vshrl.u32 %v845, 7
        %v847 = vsub.s32 5, %v846
        %v848 = vrot.slane %v823, %v847
        %v849 = vlaneseq
        %v850 = vshrl.u32 %v849, 7
        %v851 = vsub.s32 6, %v850
        %v852 = vrot.slane %v823, %v851
        %v853 = vlaneseq
        %v854 = vshrl.u32 %v853, 7
        %v855 = vsub.s32 7, %v854
        %v856 = vrot.slane %v823, %v855
        %v865 = vsub.f32 %v755, %v828
        %v866 = vsub.f32 %v756, %v832
        %v867 = vsub.f32 %v757, %v836
        %v868 = vsub.f32 %v758, %v840
        %v869 = vsub.f32 %v759, %v844
        %v870 = vsub.f32 %v760, %v848
        %v871 = vsub.f32 %v761, %v852
        %v872 = vsub.f32 %v762, %v856
        %v873 = vmul.f32 %v865, 1.442695
        %v874 = vpow.pop %v873
        %v875 = vmul.f32 %v866, 1.442695
        %v876 = vpow.pop %v875
        %v877 = vmul.f32 %v867, 1.442695
        %v878 = vpow.pop %v877
        %v879 = vmul.f32 %v868, 1.442695
        %v880 = vpow.pop %v879
        %v881 = vmul.f32 %v869, 1.442695
        %v882 = vpow.pop %v881
        %v883 = vmul.f32 %v870, 1.442695
        %v884 = vpow.pop %v883
        %v885 = vmul.f32 %v871, 1.442695
        %v886 = vpow.pop %v885
        %v887 = vmul.f32 %v872, 1.442695
        %v888 = vpow.pop %v887
        %890 = vset.pattern.permute.xlu0 0
        %891 = vperm.xlu0 %890, %v874
        %v892 = vpop.permute.xlu0 %891
        %895 = vset.pattern.permute.xlu0 0
        %896 = vperm.xlu0 %895, %v876
        %v897 = vpop.permute.xlu0 %896
        %900 = vset.pattern.permute.xlu0 0
        %901 = vperm.xlu0 %900, %v878
        %v902 = vpop.permute.xlu0 %901
        %905 = vset.pattern.permute.xlu0 0
        %906 = vperm.xlu0 %905, %v880
        %v907 = vpop.permute.xlu0 %906
        %910 = vset.pattern.permute.xlu0 0
        %911 = vperm.xlu0 %910, %v882
        %v912 = vpop.permute.xlu0 %911
        %915 = vset.pattern.permute.xlu0 0
        %916 = vperm.xlu0 %915, %v884
        %v917 = vpop.permute.xlu0 %916
        %920 = vset.pattern.permute.xlu0 0
        %921 = vperm.xlu0 %920, %v886
        %v922 = vpop.permute.xlu0 %921
        %925 = vset.pattern.permute.xlu0 0
        %926 = vperm.xlu0 %925, %v888
        %v927 = vpop.permute.xlu0 %926
        %v929 = vmul.f32 %v892, %v392
        %v930 = vmul.f32 %v897, %v393
        %v931 = vmul.f32 %v902, %v394
        %v932 = vmul.f32 %v907, %v395
        %v933 = vmul.f32 %v912, %v396
        %v934 = vmul.f32 %v917, %v397
        %v935 = vmul.f32 %v922, %v398
        %v936 = vmul.f32 %v927, %v399
        %v937 = vrot.slane %v929, 4
        %v938 = vadd.f32 %v929, %v937
        %v939 = vrot.slane %v938, 2
        %v940 = vadd.f32 %v938, %v939
        %v941 = vrot.slane %v940, 1
        %v942 = vadd.f32 %v940, %v941
        %v943 = vrot.slane %v930, 4
        %v944 = vadd.f32 %v930, %v943
        %v945 = vrot.slane %v944, 2
        %v946 = vadd.f32 %v944, %v945
        %v947 = vrot.slane %v946, 1
        %v948 = vadd.f32 %v946, %v947
        %v949 = vrot.slane %v931, 4
        %v950 = vadd.f32 %v931, %v949
        %v951 = vrot.slane %v950, 2
        %v952 = vadd.f32 %v950, %v951
        %v953 = vrot.slane %v952, 1
        %v954 = vadd.f32 %v952, %v953
        %v955 = vrot.slane %v932, 4
        %v956 = vadd.f32 %v932, %v955
        %v957 = vrot.slane %v956, 2
        %v958 = vadd.f32 %v956, %v957
        %v959 = vrot.slane %v958, 1
        %v960 = vadd.f32 %v958, %v959
        %v961 = vrot.slane %v933, 4
        %v962 = vadd.f32 %v933, %v961
        %v963 = vrot.slane %v962, 2
        %v964 = vadd.f32 %v962, %v963
        %v965 = vrot.slane %v964, 1
        %v966 = vadd.f32 %v964, %v965
        %v967 = vrot.slane %v934, 4
        %v968 = vadd.f32 %v934, %v967
        %v969 = vrot.slane %v968, 2
        %v970 = vadd.f32 %v968, %v969
        %v971 = vrot.slane %v970, 1
        %v972 = vadd.f32 %v970, %v971
        %v973 = vrot.slane %v935, 4
        %v974 = vadd.f32 %v935, %v973
        %v975 = vrot.slane %v974, 2
        %v976 = vadd.f32 %v974, %v975
        %v977 = vrot.slane %v976, 1
        %v978 = vadd.f32 %v976, %v977
        %v979 = vrot.slane %v936, 4
        %v980 = vadd.f32 %v936, %v979
        %v981 = vrot.slane %v980, 2
        %v982 = vadd.f32 %v980, %v981
        %v983 = vrot.slane %v982, 1
        %v984 = vadd.f32 %v982, %v983
        %v985 = vmul.f32 %v942, %v942
        %v986 = vmul.f32 %v948, %v948
        %v987 = vmul.f32 %v954, %v954
        %v988 = vmul.f32 %v960, %v960
        %v989 = vmul.f32 %v966, %v966
        %v990 = vmul.f32 %v972, %v972
        %v991 = vmul.f32 %v978, %v978
        %v992 = vmul.f32 %v984, %v984
        %v1001 = vsel %vm805, %v986, %v985
        %v1002 = vsel %vm807, %v987, %v1001
        %v1003 = vsel %vm809, %v988, %v1002
        %v1004 = vsel %vm811, %v989, %v1003
        %v1005 = vsel %vm813, %v990, %v1004
        %v1006 = vsel %vm815, %v991, %v1005
        %v1007 = vsel %vm817, %v992, %v1006
        %1009 = vadd.xlane.f32.xlu0 %v1007
        %v1010 = vpop.xlane.xlu0 %1009
        %v1011 = vadd.f32 %v1010, 1e-12
        %v1012 = vrsqrt.pop %v1011
        %v1014 = vrot.slane %v1012, 1
        %v1015 = vrot.slane %v1012, 2
        %v1016 = vrot.slane %v1012, 3
        %v1017 = vrot.slane %v1012, 4
        %v1018 = vrot.slane %v1012, 5
        %v1019 = vrot.slane %v1012, 6
        %v1020 = vrot.slane %v1012, 7
        %v1029 = vmul.f32 %v942, %v1012
        %v1030 = vmul.f32 %v948, %v1014
        %v1031 = vmul.f32 %v954, %v1015
        %v1032 = vmul.f32 %v960, %v1016
        %v1033 = vmul.f32 %v966, %v1017
        %v1034 = vmul.f32 %v972, %v1018
        %v1035 = vmul.f32 %v978, %v1019
        %v1036 = vmul.f32 %v984, %v1020
        %v1045 = vrot.slane %v1030, 7
        %v1046 = vsel %vm805, %v1045, %v1029
        %v1047 = vrot.slane %v1031, 6
        %v1048 = vsel %vm807, %v1047, %v1046
        %v1049 = vrot.slane %v1032, 5
        %v1050 = vsel %vm809, %v1049, %v1048
        %v1051 = vrot.slane %v1033, 4
        %v1052 = vsel %vm811, %v1051, %v1050
        %v1053 = vrot.slane %v1034, 3
        %v1054 = vsel %vm813, %v1053, %v1052
        %v1055 = vrot.slane %v1035, 2
        %v1056 = vsel %vm815, %v1055, %v1054
        %v1057 = vrot.slane %v1036, 1
        %v1058 = vsel %vm817, %v1057, %v1056
        %1060 = vst [vmem:[%s390] sm:$0xff] %v1058
        %s1061 = sand.u32 %s216, 1
        %s1062 = scalar_lea.sflag [#allocation5], %s1061
        %s1063 = sand.u32 %s216, 1
        %s1064 = smul.addr %s1063, 8
        %s1065 = scalar_lea.vmem [#allocation11], %s1064
        // Predicated region
        $region69: #{tpu_custom_call.1} parent=51 // pred_check
          %p1066 = pneg %p226
        $region70: #{tpu_custom_call.1} parent=51 // pred_check_branch
          %1068 = sbr.rel (%p1066) target = $region72
        $region71: #{tpu_custom_call.1} parent=51 // pred_region
          %s1070 = ssub.s32 128, 128
          %1071 = vsyncadd %s1062, %s1070
          %s1072 = smul.addr %s30, 128
          %s1073 = scalar_lea.hbm %s8, %s1072
          %s1075 = sshll.u32 %s1065, 4
          %s1076 = int_to_ptr.vmem [resolvable:$true] %s1075
          %1078 = dma.vmem_to_hbm [thread:$0]  %s1076, 128, %s1073, %s1062
        $region72: #{tpu_custom_call.1} parent=51 // pred_fallthru
          _
      $region52: #{tpu_custom_call.1} parent=5 // pred_fallthru
        _
      %p1079 = scmp.le.s32.totalorder 2, %s25
      // Predicated region
      $region73: #{tpu_custom_call.1} parent=5 // pred_check
        %p1080 = pneg %p1079
      $region74: #{tpu_custom_call.1} parent=5 // pred_check_branch
        %1082 = sbr.rel (%p1080) target = $region76
      $region75: #{tpu_custom_call.1} parent=5 // pred_region
        %s1083 = ssub.s32 %s25, 2
        // Predicated region
        $region77: #{tpu_custom_call.1} parent=75 // pred_check
          %p1084 = pneg %p232
        $region78: #{tpu_custom_call.1} parent=75 // pred_check_branch
          %1086 = sbr.rel (%p1084) target = $region80
        $region79: #{tpu_custom_call.1} parent=75 // pred_region
          %s1087 = sand.u32 %s217, 1
          %s1088 = scalar_lea.sflag [#allocation5], %s1087
          %s1089 = sand.u32 %s217, 1
          %s1090 = smul.addr %s1089, 8
          %s1091 = scalar_lea.vmem [#allocation11], %s1090
          %1092 = dma.done %s1088, 128
        $region80: #{tpu_custom_call.1} parent=75 // pred_fallthru
          _
      $region76: #{tpu_custom_call.1} parent=5 // pred_fallthru
        _
    $region6: #{tpu_custom_call.1} parent=1 // loop_footer
      %s29 = sadd.s32 1, %s25
    $region7: #{tpu_custom_call.1} parent=1 // loop_footer_branch
      %24 = sbr.rel target = $region3
    $region8: #{tpu_custom_call.1} parent=1 // loop_exit
      _
    %1093 = vsyncpa [#allocation4], 1
    %s1094 = scalar_lea.sflag [#allocation4], 1
    %1095 = vsyncpa %s1094, 1
    %1096 = vsyncpa [#allocation7], 1
    %s1097 = scalar_lea.sflag [#allocation7], 1
    %1098 = vsyncpa %s1097, 1
    %1099 = vsyncpa [#allocation10], 1
    %1100 = vsyncpa [#allocation5], 1
    %s1101 = scalar_lea.sflag [#allocation5], 1
    %1102 = vsyncpa %s1101, 1

</llo_original>
